<compile_context>
chip_gen: v7x
topology: tpu7x:2x2x1
jax: 0.10.0
libtpu: 0.0.40
codegen_flags: <defaults>
</compile_context>

<pallas_src>
import functools

import jax
import jax.numpy as jnp
from jax.experimental import pallas as pl
from jax.experimental.pallas import tpu as pltpu


# ----------------------------------------------------------------------------
# Pallas kernels
# ----------------------------------------------------------------------------

def _stats_kernel(x_ref, s_ref, o_ref):
    """Pooled region sums: (ft, ct, HW) x (HW, 9) -> (ft, ct, 9) f32."""
    ft, ct, hw = x_ref.shape
    x2 = x_ref[...].reshape(ft * ct, hw)              # merge leading dims
    st = jnp.dot(x2, s_ref[...], preferred_element_type=jnp.float32)
    o_ref[...] = st.reshape(ft, ct, o_ref.shape[-1])


def _apply_kernel(x_ref, g_ref, o_ref):
    """out = x * gate; gate (ft, ct, 1) broadcast along the lane (H*W) axis."""
    o_ref[...] = x_ref[...] * g_ref[...]


# ----------------------------------------------------------------------------
# Tiling / VMEM heuristics
# ----------------------------------------------------------------------------

def _vmem_capacity_bytes():
    try:
        cap = int(pltpu.get_tpu_info().vmem_capacity_bytes)
        if cap > 0:
            return cap
    except Exception:
        pass
    return 64 * 2**20          # conservative (v7x per-TensorCore VMEM)


def _channel_tile_candidates(C):
    cands = [C]
    d = C // 2
    while d >= 8:
        if C % d == 0 and d % 8 == 0:
            cands.append(d)
        d //= 2
    return cands


def _choose_tiles(nt, C, hw, elt_bytes, budget_bytes):
    cands = _channel_tile_candidates(C)
    ct = cands[-1]
    for c in cands:                       # largest channel tile whose 1-frame slab fits
        if c * hw * elt_bytes <= budget_bytes:
            ct = c
            break
    ft = 1
    for f in range(1, nt + 1):            # largest frame tile (divisor of nt) that fits
        if nt % f == 0 and f * ct * hw * elt_bytes <= budget_bytes:
            ft = f
    # keep >= 2 parallel grid steps so both v7x TensorCores get work
    if (nt // ft) * (C // ct) < 2:
        if nt > 1:
            for f in range(ft - 1, 0, -1):
                if nt % f == 0:
                    ft = f
                    break
        elif len(cands) > 1:
            ct = cands[1]
    return ft, ct


# ----------------------------------------------------------------------------
# Closed-form gate from pooled statistics (tiny tensors, plain JAX)
# ----------------------------------------------------------------------------

def _gate_from_stats(stats, params, n_segment, H, W):
    """stats: (nt, C, 9) f32 region sums of x -> gate (nt, C) f32."""
    nt = stats.shape[0]
    HW = float(H * W)
    w1f = (params['w1'] * params['bn1_scale']).astype(jnp.float32)   # (C, K)
    w3f = (params['w3'] * params['bn3_scale']).astype(jnp.float32)   # (K, C)
    b1 = params['bn1_shift'].reshape(-1).astype(jnp.float32)         # (K,)
    b3 = params['bn3_shift'].reshape(-1).astype(jnp.float32)         # (C,)
    w2 = params['w2'].astype(jnp.float32)                            # (9, K), taps di*3+dj
    wt = params['wt'].astype(jnp.float32)                            # (3, K)
    K = w1f.shape[1]

    # conv1 + BN1 pooled over each region: matmul + shift * (#pixels in region)
    regional = jnp.einsum('tcr,ck->trk', stats, w1f)                 # (nt, 9, K)
    counts = jnp.array([H * W, W, W, H, H, 1, 1, 1, 1], jnp.float32)
    regional = regional + counts[None, :, None] * b1[None, None, :]
    A_b, r0_b, rH_b, c0_b, cW_b, e00_b, e0W_b, eH0_b, eHW_b = [
        regional[:, i, :] for i in range(9)]

    # pooled zero-padded 3x3 depthwise conv2 via inclusion-exclusion of the
    # boundary rows/cols each tap never sees.
    s_all = jnp.sum(w2, axis=0)
    s_di0 = w2[0] + w2[1] + w2[2]        # taps that never see row H-1
    s_di2 = w2[6] + w2[7] + w2[8]        # taps that never see row 0
    s_dj0 = w2[0] + w2[3] + w2[6]        # taps that never see col W-1
    s_dj2 = w2[2] + w2[5] + w2[8]        # taps that never see col 0
    pc = (s_all * A_b
          - s_di0 * rH_b - s_di2 * r0_b
          - s_dj0 * cW_b - s_dj2 * c0_b
          + w2[0] * eHW_b + w2[2] * eH0_b + w2[6] * e0W_b + w2[8] * e00_b)   # (nt, K)
    pb = A_b

    # temporal mix (depthwise Conv3d (3,1,1)/stride 3 over [prev_conv, cur, next_conv])
    # with zero frames at clip boundaries, applied to the pooled sums.
    B = nt // n_segment
    pc5 = pc.reshape(B, n_segment, K)
    pb5 = pb.reshape(B, n_segment, K)
    z = jnp.zeros((B, 1, K), jnp.float32)
    prev = jnp.concatenate([z, pc5[:, :-1]], axis=1)
    nxt = jnp.concatenate([pc5[:, 1:], z], axis=1)
    y = (wt[0] * prev + wt[1] * pb5 + wt[2] * nxt).reshape(nt, K) * (1.0 / HW)

    # conv3 (1x1) + BN3 + sigmoid
    return jax.nn.sigmoid(y @ w3f + b3[None, :])                      # (nt, C)


# ----------------------------------------------------------------------------
# Forward wrapper
# ----------------------------------------------------------------------------

def chgc_forward(x_nchw, params, n_segment, donate_x=False):
    nt, c, h, w = x_nchw.shape
    assert nt % n_segment == 0
    hw = h * w
    elt = x_nchw.dtype.itemsize

    # x stays NCHW / native dtype; only a free reshape of trailing dims.
    x3 = x_nchw.reshape(nt, c, hw)

    # selector matrix: column r selects the pixels of pooled region r
    # order: [total, row0, rowH-1, col0, colW-1, (0,0), (0,W-1), (H-1,0), (H-1,W-1)]
    hi = jnp.arange(hw) // w
    wi = jnp.arange(hw) % w
    cols = [jnp.ones((hw,), jnp.float32),
            hi == 0, hi == h - 1, wi == 0, wi == w - 1,
            (hi == 0) & (wi == 0), (hi == 0) & (wi == w - 1),
            (hi == h - 1) & (wi == 0), (hi == h - 1) & (wi == w - 1)]
    sel = jnp.stack([jnp.asarray(cc, jnp.float32) for cc in cols],
                    axis=1).astype(x_nchw.dtype)                      # (hw, 9)

    # per-generation VMEM cap -> block budget -> (frame, channel-group) tiles
    cap = _vmem_capacity_bytes()
    vmem_limit = min(int(cap * 3 // 4), 96 * 2**20)
    block_budget = max(512 * 1024, min(16 * 2**20, (vmem_limit - 4 * 2**20) // 5))
    ft, ct = _choose_tiles(nt, c, hw, elt, block_budget)
    block_bytes = ft * ct * hw * elt
    vmem_limit = min(max(vmem_limit, 4 * block_bytes + 4 * 2**20),
                     max(cap - 2 * 2**20, 32 * 2**20))
    grid = (nt // ft, c // ct)
    cparams = pltpu.CompilerParams(dimension_semantics=("parallel", "parallel"),
                                   vmem_limit_bytes=int(vmem_limit))

    # ---- pass 1: pooled region statistics of x (one selector matmul per block)
    stats = pl.pallas_call(
        _stats_kernel,
        out_shape=jax.ShapeDtypeStruct((nt, c, 9), jnp.float32),
        grid=grid,
        in_specs=[pl.BlockSpec((ft, ct, hw), lambda t, g: (t, g, 0)),
                  pl.BlockSpec((hw, 9), lambda t, g: (0, 0))],
        out_specs=pl.BlockSpec((ft, ct, 9), lambda t, g: (t, g, 0)),
        compiler_params=cparams,
        cost_estimate=pl.CostEstimate(
            flops=int(2 * 9 * nt * c * hw), transcendentals=0,
            bytes_accessed=int(nt * c * hw * elt + nt * c * 9 * 4 + hw * 9 * elt)),
    )(x3, sel)

    # ---- tiny closed-form gate on (nt, 9, K)/(nt, C)-sized tensors
    gate = _gate_from_stats(stats, params, n_segment, h, w)            # (nt, C) f32
    gate3 = gate.astype(x_nchw.dtype).reshape(nt, c, 1)

    # ---- pass 2: out = x * gate (lane-broadcast of the per-(frame, channel) gate)
    out3 = pl.pallas_call(
        _apply_kernel,
        out_shape=jax.ShapeDtypeStruct((nt, c, hw), x_nchw.dtype),
        grid=grid,
        in_specs=[pl.BlockSpec((ft, ct, hw), lambda t, g: (t, g, 0)),
                  pl.BlockSpec((ft, ct, 1), lambda t, g: (t, g, 0))],
        out_specs=pl.BlockSpec((ft, ct, hw), lambda t, g: (t, g, 0)),
        compiler_params=cparams,
        cost_estimate=pl.CostEstimate(
            flops=int(nt * c * hw), transcendentals=0,
            bytes_accessed=int(2 * nt * c * hw * elt + nt * c * elt)),
        # alias the output onto x when the caller does not reuse x (halves footprint)
        input_output_aliases=({0: 0} if donate_x else {}),
    )(x3, gate3)

    return out3.reshape(nt, c, h, w)


# ----------------------------------------------------------------------------
# Parameters + pure-JAX reference (direct translation of chgc.forward)
# ----------------------------------------------------------------------------

def init_params(key, channel, reduction):
    """Deterministic synthetic parameters matching chgc.__init__ shapes."""
    K = channel // reduction
    ks = jax.random.split(key, 6)
    w1 = jax.random.normal(ks[0], (channel, K), jnp.float32) / jnp.sqrt(channel)
    w2 = jax.random.normal(ks[1], (9, K), jnp.float32) / 3.0
    wt = jax.random.normal(ks[2], (3, K), jnp.float32) * jnp.sqrt(2.0 / (1 + 1) / 3.0)
    w3 = jax.random.normal(ks[3], (K, channel), jnp.float32) / jnp.sqrt(K)

    def bn_fold(k, n):
        kg, kb, km, kv = jax.random.split(k, 4)
        gamma = 1.0 + 0.1 * jax.random.normal(kg, (n,), jnp.float32)
        beta = 0.1 * jax.random.normal(kb, (n,), jnp.float32)
        mean = 0.1 * jax.random.normal(km, (n,), jnp.float32)
        var = 1.0 + 0.1 * jnp.abs(jax.random.normal(kv, (n,), jnp.float32))
        scale = gamma / jnp.sqrt(var + 1e-5)
        shift = beta - mean * scale
        return scale.reshape(1, n), shift.reshape(1, n)

    bn1_scale, bn1_shift = bn_fold(ks[4], K)
    bn3_scale, bn3_shift = bn_fold(ks[5], channel)
    return dict(w1=w1, w2=w2, wt=wt, w3=w3,
                bn1_scale=bn1_scale, bn1_shift=bn1_shift,
                bn3_scale=bn3_scale, bn3_shift=bn3_shift)


def chgc_reference(x_nchw, params, n_segment):
    nt, c, h, w = x_nchw.shape
    K = params['w1'].shape[1]
    x = jnp.transpose(x_nchw, (0, 2, 3, 1)).astype(jnp.float32)
    bott = jnp.einsum('nhwc,ck->nhwk', x, params['w1'])
    bott = bott * params['bn1_scale'][0] + params['bn1_shift'][0]
    xp = jnp.pad(bott, ((0, 0), (1, 1), (1, 1), (0, 0)))
    conv_b = jnp.zeros_like(bott)
    for di in range(3):
        for dj in range(3):
            conv_b = conv_b + params['w2'][di * 3 + dj] * xp[:, di:di + h, dj:dj + w, :]
    B = nt // n_segment
    bott5 = bott.reshape(B, n_segment, h, w, K)
    conv5 = conv_b.reshape(B, n_segment, h, w, K)
    zeros = jnp.zeros((B, 1, h, w, K), jnp.float32)
    prev = jnp.concatenate([zeros, conv5[:, :-1]], axis=1)
    nxt = jnp.concatenate([conv5[:, 1:], zeros], axis=1)
    target = (params['wt'][0] * prev + params['wt'][1] * bott5
              + params['wt'][2] * nxt).reshape(nt, h, w, K)
    y = target.mean(axis=(1, 2))
    y = y @ params['w3']
    y = y * params['bn3_scale'][0] + params['bn3_shift'][0]
    y = jax.nn.sigmoid(y)
    out = x * y[:, None, None, :]
    return jnp.transpose(out, (0, 3, 1, 2))


if __name__ == "__main__":
    channel, reduction, n_segment = 64, 16, 8
    batch = 2
    nt = batch * n_segment
    h = w = 8

    key = jax.random.PRNGKey(0)
    kx, kp = jax.random.split(key)
    x = jax.random.normal(kx, (nt, channel, h, w), jnp.float32)   # NCHW like PyTorch
    params = init_params(kp, channel, reduction)

    fwd = jax.jit(functools.partial(chgc_forward, n_segment=n_segment))
    out = jax.block_until_ready(fwd(x, params))

    ref = chgc_reference(x, params, n_segment)
    assert out.shape == x.shape and out.dtype == x.dtype
    max_err = float(jnp.max(jnp.abs(out - ref)))
    assert jnp.allclose(out, ref, atol=1e-4, rtol=1e-4), f"max_err={max_err}"
    print("KERNEL_OK")
</pallas_src>

<mosaic_0001>
module attributes {stable_mosaic.version = 11 : i64} {
  func.func @_stats_kernel(%arg0: i32, %arg1: i32, %arg2: memref<8x64x64xf32, #tpu.memory_space<vmem>>, %arg3: memref<64x9xf32, #tpu.memory_space<vmem>>, %arg4: memref<8x64x9xf32, #tpu.memory_space<vmem>>) attributes {dimension_semantics = [#tpu.dimension_semantics<parallel>, #tpu.dimension_semantics<parallel>], iteration_bounds = array<i64: 2, 1>, scalar_prefetch = 0 : i64, scratch_operands = 0 : i64, tpu.core_type = #tpu.core_type<tc>, window_params = [{transform_indices = @transform_0, window_bounds = array<i64: 8, 64, 64>}, {pipeline_mode = #tpu.pipeline_mode<synchronous>, transform_indices = @transform_1, window_bounds = array<i64: 64, 9>}, {transform_indices = @transform_2, window_bounds = array<i64: 8, 64, 9>}]} {
    %c0 = arith.constant 0 : index
    %c0_0 = arith.constant 0 : index
    %c0_1 = arith.constant 0 : index
    %0 = vector.load %arg2[%c0, %c0_0, %c0_1] : memref<8x64x64xf32, #tpu.memory_space<vmem>>, vector<8x64x64xf32>
    %1 = vector.shape_cast %0 : vector<8x64x64xf32> to vector<512x64xf32>
    %c0_2 = arith.constant 0 : index
    %c0_3 = arith.constant 0 : index
    %2 = vector.load %arg3[%c0_2, %c0_3] : memref<64x9xf32, #tpu.memory_space<vmem>>, vector<64x9xf32>
    %cst = arith.constant dense<0.000000e+00> : vector<512x9xf32>
    %3 = tpu.matmul %1, %2, %cst {dimension_numbers = #tpu.dot_dimension_numbers<[1], [0], [0], [1], [0, 0, 1, 1], [], []>} : vector<512x64xf32>, vector<64x9xf32>, vector<512x9xf32> -> vector<512x9xf32>
    %4 = vector.shape_cast %3 : vector<512x9xf32> to vector<8x64x9xf32>
    %c0_4 = arith.constant 0 : index
    %c0_5 = arith.constant 0 : index
    %c0_6 = arith.constant 0 : index
    %5 = vector.load %arg4[%c0_4, %c0_5, %c0_6] : memref<8x64x9xf32, #tpu.memory_space<vmem>>, vector<8x64x9xf32>
    tpu.vector_store %arg4[%c0_4, %c0_5, %c0_6], %4 {strides = array<i32>} : memref<8x64x9xf32, #tpu.memory_space<vmem>>, vector<8x64x9xf32>,
    return
  }
  func.func @transform_0(%arg0: i32, %arg1: i32) -> (i32, i32, i32) {
    %c0_i32 = arith.constant 0 : i32
    %c0_i32_0 = arith.constant 0 : i32
    return %arg0, %arg1, %c0_i32 : i32, i32, i32
  }
  func.func @transform_1(%arg0: i32, %arg1: i32) -> (i32, i32) {
    %c0_i32 = arith.constant 0 : i32
    %c0_i32_0 = arith.constant 0 : i32
    %c0_i32_1 = arith.constant 0 : i32
    return %c0_i32, %c0_i32_0 : i32, i32
  }
  func.func @transform_2(%arg0: i32, %arg1: i32) -> (i32, i32, i32) {
    %c0_i32 = arith.constant 0 : i32
    %c0_i32_0 = arith.constant 0 : i32
    return %arg0, %arg1, %c0_i32 : i32, i32, i32
  }
}

module attributes {stable_mosaic.version = 11 : i64} {
  func.func @_apply_kernel(%arg0: i32, %arg1: i32, %arg2: memref<8x64x64xf32, #tpu.memory_space<vmem>>, %arg3: memref<8x64x1xf32, #tpu.memory_space<vmem>>, %arg4: memref<8x64x64xf32, #tpu.memory_space<vmem>>) attributes {dimension_semantics = [#tpu.dimension_semantics<parallel>, #tpu.dimension_semantics<parallel>], iteration_bounds = array<i64: 2, 1>, scalar_prefetch = 0 : i64, scratch_operands = 0 : i64, tpu.core_type = #tpu.core_type<tc>, window_params = [{transform_indices = @transform_0, window_bounds = array<i64: 8, 64, 64>}, {transform_indices = @transform_1, window_bounds = array<i64: 8, 64, 1>}, {transform_indices = @transform_2, window_bounds = array<i64: 8, 64, 64>}]} {
    %c0 = arith.constant 0 : index
    %c0_0 = arith.constant 0 : index
    %c0_1 = arith.constant 0 : index
    %0 = vector.load %arg2[%c0, %c0_0, %c0_1] : memref<8x64x64xf32, #tpu.memory_space<vmem>>, vector<8x64x64xf32>
    %c0_2 = arith.constant 0 : index
    %c0_3 = arith.constant 0 : index
    %c0_4 = arith.constant 0 : index
    %1 = vector.load %arg3[%c0_2, %c0_3, %c0_4] : memref<8x64x1xf32, #tpu.memory_space<vmem>>, vector<8x64x1xf32>
    %2 = vector.broadcast %1 : vector<8x64x1xf32> to vector<8x64x64xf32>
    %3 = arith.mulf %0, %2 : vector<8x64x64xf32>
    %c0_5 = arith.constant 0 : index
    %c0_6 = arith.constant 0 : index
    %c0_7 = arith.constant 0 : index
    %4 = vector.load %arg4[%c0_5, %c0_6, %c0_7] : memref<8x64x64xf32, #tpu.memory_space<vmem>>, vector<8x64x64xf32>
    tpu.vector_store %arg4[%c0_5, %c0_6, %c0_7], %3 {strides = array<i32>} : memref<8x64x64xf32, #tpu.memory_space<vmem>>, vector<8x64x64xf32>,
    return
  }
  func.func @transform_0(%arg0: i32, %arg1: i32) -> (i32, i32, i32) {
    %c0_i32 = arith.constant 0 : i32
    %c0_i32_0 = arith.constant 0 : i32
    return %arg0, %arg1, %c0_i32 : i32, i32, i32
  }
  func.func @transform_1(%arg0: i32, %arg1: i32) -> (i32, i32, i32) {
    %c0_i32 = arith.constant 0 : i32
    %c0_i32_0 = arith.constant 0 : i32
    return %arg0, %arg1, %c0_i32 : i32, i32, i32
  }
  func.func @transform_2(%arg0: i32, %arg1: i32) -> (i32, i32, i32) {
    %c0_i32 = arith.constant 0 : i32
    %c0_i32_0 = arith.constant 0 : i32
    return %arg0, %arg1, %c0_i32 : i32, i32, i32
  }
}

</mosaic_0001>

<llo_original>
// kernel: chgc_forward.2
$region0: #{chgc_forward.2}
  #allocation0 [shape = 'u32[]', space=smem, size = 0x4, offset = 0x4, fixed_abs, tag = 'smem constant byte address 0x4 - core index']
  #allocation1 [shape = 'u32[144,128]{1,0:T(1,128)}', space=vmem, size = 0x12000, scoped, tag = 'internal scratch']
  %s0 = inlined_call_operand.vmem [shape: f32[16,64,64], index: 0, kind: input, shape index: {}]
  %s1 = inlined_call_operand.vmem [shape: f32[64,9], index: 1, kind: input, shape index: {}]
  %s2 = inlined_call_operand.vmem [shape: f32[16,64,9], index: 2, kind: output, shape index: {}]
  %s3 = sld [smem:[#allocation0]]
  $region41: #{chgc_forward.2} parent=0
    _
  %s5 = ssub.s32 1, %s3
  %s6 = scalar_select 0, %s5, %s3
  loop: start=0, step=1, limit=4
  $region2: #{chgc_forward.2} parent=0 // loop_pre_header
    _
  $region3: #{chgc_forward.2} parent=0 // loop_header
    %s8 = sphi 0, %s12
    %p9 = scmp.ge.s32.totalorder %s8, 4
    %s15 = sphi 0, %s27
    %s16 = sphi 0, %s23
    %s17 = sphi 0, %s15
    %s18 = sphi 0, %s16
    %s19 = sphi 0, %s17
    %s20 = sphi 0, %s18
    %s32 = sphi 0, %s34
    %s35 = sphi 0, %s32
    %s36 = sphi 0, %s35
    %s52 = sphi 0, %s36
    %s56 = sphi 0, %s56
    %s58 = sphi 0, %s56
    %s59 = sphi 0, %s58
    %s73 = sphi 0, %s59
    %s81 = sphi 0, %s83
    %s84 = sphi 0, %s81
    %s85 = sphi 0, %s84
    %s101 = sphi 0, %s85
  $region4: #{chgc_forward.2} parent=0 // loop_header_branch
    %11 = sbr.rel (%p9) target = $region8
  $region5: #{chgc_forward.2} parent=0 // loop_body
    %s13 = ssub.s32 %s8, 1
    %s14 = ssub.s32 %s8, 2
    %s21 = sadd.s32 1, %s16
    %p22 = scmp.ge.s32.totalorder %s21, 1
    %s23 = scalar_select %p22, 0, %s21
    %s24 = sadd.s32 1, %s15
    %s25 = scalar_select %p22, %s24, %s15
    %p26 = scmp.ge.s32.totalorder %s25, 2
    %s27 = scalar_select %p26, 0, %s25
    %s28 = ssub.s32 %s15, %s27
    %s29 = ssub.s32 %s16, %s23
    %s30 = sor.u32 %s28, %s29
    %p31 = scmp.eq.s32.totalorder %s30, 0
    %s33 = sadd.s32 %s32, 1
    %s34 = scalar_select %p31, %s32, %s33
    %p37 = pneg %p31
    %p38 = scmp.eq.s32.totalorder %s8, 1
    %p39 = por %p37, %p38
    %p40 = scmp.ne.s32.totalorder %s32, %s35
    %p41 = scmp.eq.s32.totalorder %s8, 0
    %p42 = por %p40, %p41
    %p43 = scmp.ne.s32.totalorder %s32, %s35
    %p44 = scmp.eq.s32.totalorder %s13, 1
    %p45 = por %p43, %p44
    %p46 = scmp.ne.s32.totalorder %s35, %s36
    %p47 = scmp.eq.s32.totalorder %s13, 0
    %p48 = por %p46, %p47
    %p49 = scmp.ne.s32.totalorder %s35, %s36
    %p50 = scmp.eq.s32.totalorder %s14, 1
    %p51 = por %p49, %p50
    %p53 = scmp.ne.s32.totalorder %s36, %s52
    %p54 = scmp.eq.s32.totalorder %s14, 0
    %p55 = por %p53, %p54
    %s57 = sadd.s32 %s56, 1
    %p60 = scmp.eq.s32.totalorder %s8, 1
    %p61 = scmp.ne.s32.totalorder %s56, %s58
    %p62 = scmp.eq.s32.totalorder %s8, 0
    %p63 = por %p61, %p62
    %p64 = scmp.ne.s32.totalorder %s56, %s58
    %p65 = scmp.eq.s32.totalorder %s13, 1
    %p66 = por %p64, %p65
    %p67 = scmp.ne.s32.totalorder %s58, %s59
    %p68 = scmp.eq.s32.totalorder %s13, 0
    %p69 = por %p67, %p68
    %p70 = scmp.ne.s32.totalorder %s58, %s59
    %p71 = scmp.eq.s32.totalorder %s14, 1
    %p72 = por %p70, %p71
    %p74 = scmp.ne.s32.totalorder %s59, %s73
    %p75 = scmp.eq.s32.totalorder %s14, 0
    %p76 = por %p74, %p75
    %s77 = ssub.s32 %s15, %s27
    %s78 = ssub.s32 %s16, %s23
    %s79 = sor.u32 %s77, %s78
    %p80 = scmp.eq.s32.totalorder %s79, 0
    %s82 = sadd.s32 %s81, 1
    %s83 = scalar_select %p80, %s81, %s82
    %p86 = pneg %p80
    %p87 = scmp.eq.s32.totalorder %s8, 1
    %p88 = por %p86, %p87
    %p89 = scmp.ne.s32.totalorder %s81, %s84
    %p90 = scmp.eq.s32.totalorder %s8, 0
    %p91 = por %p89, %p90
    %p92 = scmp.ne.s32.totalorder %s81, %s84
    %p93 = scmp.eq.s32.totalorder %s13, 1
    %p94 = por %p92, %p93
    %p95 = scmp.ne.s32.totalorder %s84, %s85
    %p96 = scmp.eq.s32.totalorder %s13, 0
    %p97 = por %p95, %p96
    %p98 = scmp.ne.s32.totalorder %s84, %s85
    %p99 = scmp.eq.s32.totalorder %s14, 1
    %p100 = por %p98, %p99
    %p102 = scmp.ne.s32.totalorder %s85, %s101
    %p103 = scmp.eq.s32.totalorder %s14, 0
    %p104 = por %p102, %p103
    %p105 = scmp.le.s32.totalorder 1, %s8
    %p106 = scmp.lt.s32.totalorder %s8, 3
    %p107 = pnand %p105, %p106
    %p108 = pneg %p107
    // Predicated region
    $region9: #{chgc_forward.2} parent=5 // pred_check
      _
    $region10: #{chgc_forward.2} parent=5 // pred_check_branch
      %110 = sbr.rel (%p107) target = $region12
    $region11: #{chgc_forward.2} parent=5 // pred_region
      %s111 = ssub.s32 %s8, 1
      // Predicated region
      $region13: #{chgc_forward.2} parent=11 // pred_check
        %p112 = pneg %p69
      $region14: #{chgc_forward.2} parent=11 // pred_check_branch
        %114 = sbr.rel (%p112) target = $region16
      $region15: #{chgc_forward.2} parent=11 // pred_region
        _
      $region16: #{chgc_forward.2} parent=11 // pred_fallthru
        _
    $region12: #{chgc_forward.2} parent=5 // pred_fallthru
      _
    %p115 = scmp.lt.s32.totalorder %s8, 2
    // Predicated region
    $region17: #{chgc_forward.2} parent=5 // pred_check
      %p116 = pneg %p115
    $region18: #{chgc_forward.2} parent=5 // pred_check_branch
      %118 = sbr.rel (%p116) target = $region20
    $region19: #{chgc_forward.2} parent=5 // pred_region
      // Predicated region
      $region21: #{chgc_forward.2} parent=19 // pred_check
        %p119 = pneg %p42
      $region22: #{chgc_forward.2} parent=19 // pred_check_branch
        %121 = sbr.rel (%p119) target = $region24
      $region23: #{chgc_forward.2} parent=19 // pred_region
        %s122 = smul.u32 8, %s15
        %s123 = smul.u32 8, %s16
        %p124 = scmp.lt.s32.totalorder %s122, 15
        %s125 = scalar_select %p124, %s122, 15
        %p126 = scmp.lt.s32.totalorder %s123, 7
        %s127 = scalar_select %p126, %s123, 7
        %s128 = smul.addr %s125, 8
        %s129 = sadd.s32 %s127, %s128
        %s130 = smul.addr %s129, 8
        %s131 = scalar_lea.vmem %s0, %s130
        %s132 = smul.u32 8, %s15
        %s133 = smul.u32 8, %s16
      $region24: #{chgc_forward.2} parent=19 // pred_fallthru
        _
    $region20: #{chgc_forward.2} parent=5 // pred_fallthru
      _
    %p134 = scmp.le.s32.totalorder 1, %s8
    %p135 = scmp.lt.s32.totalorder %s8, 3
    %p136 = pnand %p134, %p135
    %p137 = pneg %p136
    // Predicated region
    $region25: #{chgc_forward.2} parent=5 // pred_check
      _
    $region26: #{chgc_forward.2} parent=5 // pred_check_branch
      %139 = sbr.rel (%p136) target = $region28
    $region27: #{chgc_forward.2} parent=5 // pred_region
      %s140 = ssub.s32 %s8, 1
      %s141 = smul.u32 8, %s17
      %s142 = smul.u32 8, %s18
      %p143 = scmp.lt.s32.totalorder %s141, 15
      %s144 = scalar_select %p143, %s141, 15
      %p145 = scmp.lt.s32.totalorder %s142, 7
      %s146 = scalar_select %p145, %s142, 7
      %s147 = smul.addr %s144, 8
      %s148 = sadd.s32 %s146, %s147
      %s149 = smul.addr %s148, 8
      %s150 = scalar_lea.vmem %s0, %s149
      %p151 = pneg %p48
      %p152 = pneg %p45
      %p153 = pneg %p69
      %p154 = pneg %p66
      %p155 = pneg %p97
      %p156 = pneg %p94
      %s157 = smul.u32 8, %s17
      %s158 = smul.u32 8, %s18
      %p159 = scmp.lt.s32.totalorder %s157, 15
      %s160 = scalar_select %p159, %s157, 15
      %p161 = scmp.lt.s32.totalorder %s158, 7
      %s162 = scalar_select %p161, %s158, 7
      %s163 = smul.addr %s160, 8
      %s164 = sadd.s32 %s162, %s163
      %s165 = smul.addr %s164, 8
      %s166 = scalar_lea.vmem %s2, %s165
      %s167 = smul.u32 8, %s17
      %s168 = smul.u32 8, %s18
      %p169 = scmp.lt.s32.totalorder %s167, 15
      %s170 = scalar_select %p169, %s167, 15
      %p171 = scmp.lt.s32.totalorder %s168, 7
      %s172 = scalar_select %p171, %s168, 7
      %s173 = smul.addr %s170, 8
      %s174 = sadd.s32 %s172, %s173
      %s175 = smul.addr %s174, 8
      %s176 = scalar_lea.vmem %s0, %s175
      %s177 = smul.u32 8, %s17
      %s178 = smul.u32 8, %s18
      %s179 = smul.u32 8, %s17
      %s180 = smul.u32 8, %s18
      %p181 = scmp.lt.s32.totalorder %s179, 15
      %s182 = scalar_select %p181, %s179, 15
      %p183 = scmp.lt.s32.totalorder %s180, 7
      %s184 = scalar_select %p183, %s180, 7
      %s185 = smul.addr %s182, 8
      %s186 = sadd.s32 %s184, %s185
      %s187 = smul.addr %s186, 8
      %s188 = scalar_lea.vmem %s2, %s187
      %s189 = smul.u32 8, %s17
      %s190 = smul.u32 8, %s18
      %v191 = vld [vmem:[%s176] sm:$0xff]
      %v192 = vld [vmem:[%s176 + $0x8] sm:$0xff]
      %v193 = vld [vmem:[%s176 + $0x10] sm:$0xff]
      %v194 = vld [vmem:[%s176 + $0x18] sm:$0xff]
      %v195 = vld [vmem:[%s176 + $0x20] sm:$0xff]
      %v196 = vld [vmem:[%s176 + $0x28] sm:$0xff]
      %v197 = vld [vmem:[%s176 + $0x30] sm:$0xff]
      %v198 = vld [vmem:[%s176 + $0x38] sm:$0xff]
      %v199 = vld [vmem:[%s176 + $0x40] sm:$0xff]
      %v200 = vld [vmem:[%s176 + $0x48] sm:$0xff]
      %v201 = vld [vmem:[%s176 + $0x50] sm:$0xff]
      %v202 = vld [vmem:[%s176 + $0x58] sm:$0xff]
      %v203 = vld [vmem:[%s176 + $0x60] sm:$0xff]
      %v204 = vld [vmem:[%s176 + $0x68] sm:$0xff]
      %v205 = vld [vmem:[%s176 + $0x70] sm:$0xff]
      %v206 = vld [vmem:[%s176 + $0x78] sm:$0xff]
      %v207 = vld [vmem:[%s176 + $0x80] sm:$0xff]
      %v208 = vld [vmem:[%s176 + $0x88] sm:$0xff]
      %v209 = vld [vmem:[%s176 + $0x90] sm:$0xff]
      %v210 = vld [vmem:[%s176 + $0x98] sm:$0xff]
      %v211 = vld [vmem:[%s176 + $0xa0] sm:$0xff]
      %v212 = vld [vmem:[%s176 + $0xa8] sm:$0xff]
      %v213 = vld [vmem:[%s176 + $0xb0] sm:$0xff]
      %v214 = vld [vmem:[%s176 + $0xb8] sm:$0xff]
      %v215 = vld [vmem:[%s176 + $0xc0] sm:$0xff]
      %v216 = vld [vmem:[%s176 + $0xc8] sm:$0xff]
      %v217 = vld [vmem:[%s176 + $0xd0] sm:$0xff]
      %v218 = vld [vmem:[%s176 + $0xd8] sm:$0xff]
      %v219 = vld [vmem:[%s176 + $0xe0] sm:$0xff]
      %v220 = vld [vmem:[%s176 + $0xe8] sm:$0xff]
      %v221 = vld [vmem:[%s176 + $0xf0] sm:$0xff]
      %v222 = vld [vmem:[%s176 + $0xf8] sm:$0xff]
      %v223 = vld [vmem:[%s176 + $0x100] sm:$0xff]
      %v224 = vld [vmem:[%s176 + $0x108] sm:$0xff]
      %v225 = vld [vmem:[%s176 + $0x110] sm:$0xff]
      %v226 = vld [vmem:[%s176 + $0x118] sm:$0xff]
      %v227 = vld [vmem:[%s176 + $0x120] sm:$0xff]
      %v228 = vld [vmem:[%s176 + $0x128] sm:$0xff]
      %v229 = vld [vmem:[%s176 + $0x130] sm:$0xff]
      %v230 = vld [vmem:[%s176 + $0x138] sm:$0xff]
      %v231 = vld [vmem:[%s176 + $0x140] sm:$0xff]
      %v232 = vld [vmem:[%s176 + $0x148] sm:$0xff]
      %v233 = vld [vmem:[%s176 + $0x150] sm:$0xff]
      %v234 = vld [vmem:[%s176 + $0x158] sm:$0xff]
      %v235 = vld [vmem:[%s176 + $0x160] sm:$0xff]
      %v236 = vld [vmem:[%s176 + $0x168] sm:$0xff]
      %v237 = vld [vmem:[%s176 + $0x170] sm:$0xff]
      %v238 = vld [vmem:[%s176 + $0x178] sm:$0xff]
      %v239 = vld [vmem:[%s176 + $0x180] sm:$0xff]
      %v240 = vld [vmem:[%s176 + $0x188] sm:$0xff]
      %v241 = vld [vmem:[%s176 + $0x190] sm:$0xff]
      %v242 = vld [vmem:[%s176 + $0x198] sm:$0xff]
      %v243 = vld [vmem:[%s176 + $0x1a0] sm:$0xff]
      %v244 = vld [vmem:[%s176 + $0x1a8] sm:$0xff]
      %v245 = vld [vmem:[%s176 + $0x1b0] sm:$0xff]
      %v246 = vld [vmem:[%s176 + $0x1b8] sm:$0xff]
      %v247 = vld [vmem:[%s176 + $0x1c0] sm:$0xff]
      %v248 = vld [vmem:[%s176 + $0x1c8] sm:$0xff]
      %v249 = vld [vmem:[%s176 + $0x1d0] sm:$0xff]
      %v250 = vld [vmem:[%s176 + $0x1d8] sm:$0xff]
      %v251 = vld [vmem:[%s176 + $0x1e0] sm:$0xff]
      %v252 = vld [vmem:[%s176 + $0x1e8] sm:$0xff]
      %v253 = vld [vmem:[%s176 + $0x1f0] sm:$0xff]
      %v254 = vld [vmem:[%s176 + $0x1f8] sm:$0xff]
      %v255 = vld [vmem:[%s1] sm:$0xff]
      %v256 = vld [vmem:[%s1 + $0x8] sm:$0xff]
      %v257 = vld [vmem:[%s1 + $0x10] sm:$0xff]
      %v258 = vld [vmem:[%s1 + $0x18] sm:$0xff]
      %v259 = vld [vmem:[%s1 + $0x20] sm:$0xff]
      %v260 = vld [vmem:[%s1 + $0x28] sm:$0xff]
      %v261 = vld [vmem:[%s1 + $0x30] sm:$0xff]
      %v262 = vld [vmem:[%s1 + $0x38] sm:$0xff]
      %vm263 = vcmask 523264
      %v265 = vsel %vm263, %v191, 0
      %v268 = vsel %vm263, %v192, 0
      %v271 = vsel %vm263, %v193, 0
      %v274 = vsel %vm263, %v194, 0
      %v277 = vsel %vm263, %v195, 0
      %v280 = vsel %vm263, %v196, 0
      %v283 = vsel %vm263, %v197, 0
      %v286 = vsel %vm263, %v198, 0
      %v289 = vsel %vm263, %v199, 0
      %v292 = vsel %vm263, %v200, 0
      %v295 = vsel %vm263, %v201, 0
      %v298 = vsel %vm263, %v202, 0
      %v301 = vsel %vm263, %v203, 0
      %v304 = vsel %vm263, %v204, 0
      %v307 = vsel %vm263, %v205, 0
      %v310 = vsel %vm263, %v206, 0
      %v313 = vsel %vm263, %v207, 0
      %v316 = vsel %vm263, %v208, 0
      %v319 = vsel %vm263, %v209, 0
      %v322 = vsel %vm263, %v210, 0
      %v325 = vsel %vm263, %v211, 0
      %v328 = vsel %vm263, %v212, 0
      %v331 = vsel %vm263, %v213, 0
      %v334 = vsel %vm263, %v214, 0
      %v337 = vsel %vm263, %v215, 0
      %v340 = vsel %vm263, %v216, 0
      %v343 = vsel %vm263, %v217, 0
      %v346 = vsel %vm263, %v218, 0
      %v349 = vsel %vm263, %v219, 0
      %v352 = vsel %vm263, %v220, 0
      %v355 = vsel %vm263, %v221, 0
      %v358 = vsel %vm263, %v222, 0
      %v361 = vsel %vm263, %v223, 0
      %v364 = vsel %vm263, %v224, 0
      %v367 = vsel %vm263, %v225, 0
      %v370 = vsel %vm263, %v226, 0
      %v373 = vsel %vm263, %v227, 0
      %v376 = vsel %vm263, %v228, 0
      %v379 = vsel %vm263, %v229, 0
      %v382 = vsel %vm263, %v230, 0
      %v385 = vsel %vm263, %v231, 0
      %v388 = vsel %vm263, %v232, 0
      %v391 = vsel %vm263, %v233, 0
      %v394 = vsel %vm263, %v234, 0
      %v397 = vsel %vm263, %v235, 0
      %v400 = vsel %vm263, %v236, 0
      %v403 = vsel %vm263, %v237, 0
      %v406 = vsel %vm263, %v238, 0
      %v409 = vsel %vm263, %v239, 0
      %v412 = vsel %vm263, %v240, 0
      %v415 = vsel %vm263, %v241, 0
      %v418 = vsel %vm263, %v242, 0
      %v421 = vsel %vm263, %v243, 0
      %v424 = vsel %vm263, %v244, 0
      %v427 = vsel %vm263, %v245, 0
      %v430 = vsel %vm263, %v246, 0
      %v433 = vsel %vm263, %v247, 0
      %v436 = vsel %vm263, %v248, 0
      %v439 = vsel %vm263, %v249, 0
      %v442 = vsel %vm263, %v250, 0
      %v445 = vsel %vm263, %v251, 0
      %v448 = vsel %vm263, %v252, 0
      %v451 = vsel %vm263, %v253, 0
      %v454 = vsel %vm263, %v254, 0
      %456 = vmatprep.subr.mxu0 0.0
      %457 = vmatpush1.msra.mxu0 %v255
      %458 = vmatprep.subr.mxu0 0.0
      %459 = vmatpush1.msra.mxu0 %v256
      %460 = vmatprep.subr.mxu0 0.0
      %461 = vmatpush1.msra.mxu0 %v257
      %462 = vmatprep.subr.mxu0 0.0
      %463 = vmatpush1.msra.mxu0 %v258
      %464 = vmatprep.subr.mxu0 0.0
      %465 = vmatpush1.msra.mxu0 %v259
      %466 = vmatprep.subr.mxu0 0.0
      %467 = vmatpush1.msra.mxu0 %v260
      %468 = vmatprep.subr.mxu0 0.0
      %469 = vmatpush1.msra.mxu0 %v261
      %470 = vmatprep.subr.mxu0 0.0
      %471 = vmatpush1.msra.mxu0 %v262
      %472 = vmatprep.subr.mxu0 0.0
      %473 = vmatpush1.msra.mxu0 0.0
      %474 = vmatprep.subr.mxu0 0.0
      %475 = vmatpush1.msra.mxu0 0.0
      %476 = vmatprep.subr.mxu0 0.0
      %477 = vmatpush1.msra.mxu0 0.0
      %478 = vmatprep.subr.mxu0 0.0
      %479 = vmatpush1.msra.mxu0 0.0
      %480 = vmatprep.subr.mxu0 0.0
      %481 = vmatpush1.msra.mxu0 0.0
      %482 = vmatprep.subr.mxu0 0.0
      %483 = vmatpush1.msra.mxu0 0.0
      %484 = vmatprep.subr.mxu0 0.0
      %485 = vmatpush1.msra.mxu0 0.0
      %486 = vmatprep.subr.mxu0 0.0
      %487 = vmatpush1.msra.mxu0 0.0
      %488 = vmatprep.subr.mxu0 0.0
      %489 = vmatpush1.msra.mxu0 0.0
      %490 = vmatprep.subr.mxu0 0.0
      %491 = vmatpush1.msra.mxu0 0.0
      %492 = vmatprep.subr.mxu0 0.0
      %493 = vmatpush1.msra.mxu0 0.0
      %494 = vmatprep.subr.mxu0 0.0
      %495 = vmatpush1.msra.mxu0 0.0
      %496 = vmatprep.subr.mxu0 0.0
      %497 = vmatpush1.msra.mxu0 0.0
      %498 = vmatprep.subr.mxu0 0.0
      %499 = vmatpush1.msra.mxu0 0.0
      %500 = vmatprep.subr.mxu0 0.0
      %501 = vmatpush1.msra.mxu0 0.0
      %502 = vmatprep.subr.mxu0 0.0
      %503 = vmatpush1.msra.mxu0 0.0
      %504 = vmatprep.subr.mxu0 0.0
      %505 = vmatpush1.msra.mxu0 0.0
      %506 = vmatprep.subr.mxu0 0.0
      %507 = vmatpush1.msra.mxu0 0.0
      %508 = vmatprep.subr.mxu0 0.0
      %509 = vmatpush1.msra.mxu0 0.0
      %510 = vmatprep.subr.mxu0 0.0
      %511 = vmatpush1.msra.mxu0 0.0
      %512 = vmatprep.subr.mxu0 0.0
      %513 = vmatpush1.msra.mxu0 0.0
      %514 = vmatprep.subr.mxu0 0.0
      %515 = vmatpush1.msra.mxu0 0.0
      %516 = vmatprep.subr.mxu0 0.0
      %517 = vmatpush1.msra.mxu0 0.0
      %518 = vmatprep.subr.mxu0 0.0
      %519 = vmatpush1.msra.mxu0 0.0
      %520 = vmatprep.mubr.f32.mxu0 0.0
      %521 = vmatmul.mubr.f32.gmra.mrb[0].mxu0 %v265
      %v522 = vpop.f32.mrb[0].mxu0
      %v523 = vadd.f32 0.0, %v522
      %v524 = vpop.f32.mrb[0].mxu0
      %525 = vmatprep.mubr.f32.mxu0 0.0
      %526 = vmatmul.mubr.f32.gmra.mrb[0].mxu0 %v268
      %v527 = vpop.f32.mrb[0].mxu0
      %v528 = vadd.f32 0.0, %v527
      %v529 = vpop.f32.mrb[0].mxu0
      %530 = vmatprep.mubr.f32.mxu0 0.0
      %531 = vmatmul.mubr.f32.gmra.mrb[0].mxu0 %v271
      %v532 = vpop.f32.mrb[0].mxu0
      %v533 = vadd.f32 0.0, %v532
      %v534 = vpop.f32.mrb[0].mxu0
      %535 = vmatprep.mubr.f32.mxu0 0.0
      %536 = vmatmul.mubr.f32.gmra.mrb[0].mxu0 %v274
      %v537 = vpop.f32.mrb[0].mxu0
      %v538 = vadd.f32 0.0, %v537
      %v539 = vpop.f32.mrb[0].mxu0
      %540 = vmatprep.mubr.f32.mxu0 0.0
      %541 = vmatmul.mubr.f32.gmra.mrb[0].mxu0 %v277
      %v542 = vpop.f32.mrb[0].mxu0
      %v543 = vadd.f32 0.0, %v542
      %v544 = vpop.f32.mrb[0].mxu0
      %545 = vmatprep.mubr.f32.mxu0 0.0
      %546 = vmatmul.mubr.f32.gmra.mrb[0].mxu0 %v280
      %v547 = vpop.f32.mrb[0].mxu0
      %v548 = vadd.f32 0.0, %v547
      %v549 = vpop.f32.mrb[0].mxu0
      %550 = vmatprep.mubr.f32.mxu0 0.0
      %551 = vmatmul.mubr.f32.gmra.mrb[0].mxu0 %v283
      %v552 = vpop.f32.mrb[0].mxu0
      %v553 = vadd.f32 0.0, %v552
      %v554 = vpop.f32.mrb[0].mxu0
      %555 = vmatprep.mubr.f32.mxu0 0.0
      %556 = vmatmul.mubr.f32.gmra.mrb[0].mxu0 %v286
      %v557 = vpop.f32.mrb[0].mxu0
      %v558 = vadd.f32 0.0, %v557
      %v559 = vpop.f32.mrb[0].mxu0
      %560 = vmatprep.mubr.f32.mxu0 0.0
      %561 = vmatmul.mubr.f32.gmra.mrb[0].mxu0 %v289
      %v562 = vpop.f32.mrb[0].mxu0
      %v563 = vadd.f32 0.0, %v562
      %v564 = vpop.f32.mrb[0].mxu0
      %565 = vmatprep.mubr.f32.mxu0 0.0
      %566 = vmatmul.mubr.f32.gmra.mrb[0].mxu0 %v292
      %v567 = vpop.f32.mrb[0].mxu0
      %v568 = vadd.f32 0.0, %v567
      %v569 = vpop.f32.mrb[0].mxu0
      %570 = vmatprep.mubr.f32.mxu0 0.0
      %571 = vmatmul.mubr.f32.gmra.mrb[0].mxu0 %v295
      %v572 = vpop.f32.mrb[0].mxu0
      %v573 = vadd.f32 0.0, %v572
      %v574 = vpop.f32.mrb[0].mxu0
      %575 = vmatprep.mubr.f32.mxu0 0.0
      %576 = vmatmul.mubr.f32.gmra.mrb[0].mxu0 %v298
      %v577 = vpop.f32.mrb[0].mxu0
      %v578 = vadd.f32 0.0, %v577
      %v579 = vpop.f32.mrb[0].mxu0
      %580 = vmatprep.mubr.f32.mxu0 0.0
      %581 = vmatmul.mubr.f32.gmra.mrb[0].mxu0 %v301
      %v582 = vpop.f32.mrb[0].mxu0
      %v583 = vadd.f32 0.0, %v582
      %v584 = vpop.f32.mrb[0].mxu0
      %585 = vmatprep.mubr.f32.mxu0 0.0
      %586 = vmatmul.mubr.f32.gmra.mrb[0].mxu0 %v304
      %v587 = vpop.f32.mrb[0].mxu0
      %v588 = vadd.f32 0.0, %v587
      %v589 = vpop.f32.mrb[0].mxu0
      %590 = vmatprep.mubr.f32.mxu0 0.0
      %591 = vmatmul.mubr.f32.gmra.mrb[0].mxu0 %v307
      %v592 = vpop.f32.mrb[0].mxu0
      %v593 = vadd.f32 0.0, %v592
      %v594 = vpop.f32.mrb[0].mxu0
      %595 = vmatprep.mubr.f32.mxu0 0.0
      %596 = vmatmul.mubr.f32.gmra.mrb[0].mxu0 %v310
      %v597 = vpop.f32.mrb[0].mxu0
      %v598 = vadd.f32 0.0, %v597
      %v599 = vpop.f32.mrb[0].mxu0
      %600 = vmatprep.mubr.f32.mxu0 0.0
      %601 = vmatmul.mubr.f32.gmra.mrb[0].mxu0 %v313
      %v602 = vpop.f32.mrb[0].mxu0
      %v603 = vadd.f32 0.0, %v602
      %v604 = vpop.f32.mrb[0].mxu0
      %605 = vmatprep.mubr.f32.mxu0 0.0
      %606 = vmatmul.mubr.f32.gmra.mrb[0].mxu0 %v316
      %v607 = vpop.f32.mrb[0].mxu0
      %v608 = vadd.f32 0.0, %v607
      %v609 = vpop.f32.mrb[0].mxu0
      %610 = vmatprep.mubr.f32.mxu0 0.0
      %611 = vmatmul.mubr.f32.gmra.mrb[0].mxu0 %v319
      %v612 = vpop.f32.mrb[0].mxu0
      %v613 = vadd.f32 0.0, %v612
      %v614 = vpop.f32.mrb[0].mxu0
      %615 = vmatprep.mubr.f32.mxu0 0.0
      %616 = vmatmul.mubr.f32.gmra.mrb[0].mxu0 %v322
      %v617 = vpop.f32.mrb[0].mxu0
      %v618 = vadd.f32 0.0, %v617
      %v619 = vpop.f32.mrb[0].mxu0
      %620 = vmatprep.mubr.f32.mxu0 0.0
      %621 = vmatmul.mubr.f32.gmra.mrb[0].mxu0 %v325
      %v622 = vpop.f32.mrb[0].mxu0
      %v623 = vadd.f32 0.0, %v622
      %v624 = vpop.f32.mrb[0].mxu0
      %625 = vmatprep.mubr.f32.mxu0 0.0
      %626 = vmatmul.mubr.f32.gmra.mrb[0].mxu0 %v328
      %v627 = vpop.f32.mrb[0].mxu0
      %v628 = vadd.f32 0.0, %v627
      %v629 = vpop.f32.mrb[0].mxu0
      %630 = vmatprep.mubr.f32.mxu0 0.0
      %631 = vmatmul.mubr.f32.gmra.mrb[0].mxu0 %v331
      %v632 = vpop.f32.mrb[0].mxu0
      %v633 = vadd.f32 0.0, %v632
      %v634 = vpop.f32.mrb[0].mxu0
      %635 = vmatprep.mubr.f32.mxu0 0.0
      %636 = vmatmul.mubr.f32.gmra.mrb[0].mxu0 %v334
      %v637 = vpop.f32.mrb[0].mxu0
      %v638 = vadd.f32 0.0, %v637
      %v639 = vpop.f32.mrb[0].mxu0
      %640 = vmatprep.mubr.f32.mxu0 0.0
      %641 = vmatmul.mubr.f32.gmra.mrb[0].mxu0 %v337
      %v642 = vpop.f32.mrb[0].mxu0
      %v643 = vadd.f32 0.0, %v642
      %v644 = vpop.f32.mrb[0].mxu0
      %645 = vmatprep.mubr.f32.mxu0 0.0
      %646 = vmatmul.mubr.f32.gmra.mrb[0].mxu0 %v340
      %v647 = vpop.f32.mrb[0].mxu0
      %v648 = vadd.f32 0.0, %v647
      %v649 = vpop.f32.mrb[0].mxu0
      %650 = vmatprep.mubr.f32.mxu0 0.0
      %651 = vmatmul.mubr.f32.gmra.mrb[0].mxu0 %v343
      %v652 = vpop.f32.mrb[0].mxu0
      %v653 = vadd.f32 0.0, %v652
      %v654 = vpop.f32.mrb[0].mxu0
      %655 = vmatprep.mubr.f32.mxu0 0.0
      %656 = vmatmul.mubr.f32.gmra.mrb[0].mxu0 %v346
      %v657 = vpop.f32.mrb[0].mxu0
      %v658 = vadd.f32 0.0, %v657
      %v659 = vpop.f32.mrb[0].mxu0
      %660 = vmatprep.mubr.f32.mxu0 0.0
      %661 = vmatmul.mubr.f32.gmra.mrb[0].mxu0 %v349
      %v662 = vpop.f32.mrb[0].mxu0
      %v663 = vadd.f32 0.0, %v662
      %v664 = vpop.f32.mrb[0].mxu0
      %665 = vmatprep.mubr.f32.mxu0 0.0
      %666 = vmatmul.mubr.f32.gmra.mrb[0].mxu0 %v352
      %v667 = vpop.f32.mrb[0].mxu0
      %v668 = vadd.f32 0.0, %v667
      %v669 = vpop.f32.mrb[0].mxu0
      %670 = vmatprep.mubr.f32.mxu0 0.0
      %671 = vmatmul.mubr.f32.gmra.mrb[0].mxu0 %v355
      %v672 = vpop.f32.mrb[0].mxu0
      %v673 = vadd.f32 0.0, %v672
      %v674 = vpop.f32.mrb[0].mxu0
      %675 = vmatprep.mubr.f32.mxu0 0.0
      %676 = vmatmul.mubr.f32.gmra.mrb[0].mxu0 %v358
      %v677 = vpop.f32.mrb[0].mxu0
      %v678 = vadd.f32 0.0, %v677
      %v679 = vpop.f32.mrb[0].mxu0
      %680 = vmatprep.mubr.f32.mxu0 0.0
      %681 = vmatmul.mubr.f32.gmra.mrb[0].mxu0 %v361
      %v682 = vpop.f32.mrb[0].mxu0
      %v683 = vadd.f32 0.0, %v682
      %v684 = vpop.f32.mrb[0].mxu0
      %685 = vmatprep.mubr.f32.mxu0 0.0
      %686 = vmatmul.mubr.f32.gmra.mrb[0].mxu0 %v364
      %v687 = vpop.f32.mrb[0].mxu0
      %v688 = vadd.f32 0.0, %v687
      %v689 = vpop.f32.mrb[0].mxu0
      %690 = vmatprep.mubr.f32.mxu0 0.0
      %691 = vmatmul.mubr.f32.gmra.mrb[0].mxu0 %v367
      %v692 = vpop.f32.mrb[0].mxu0
      %v693 = vadd.f32 0.0, %v692
      %v694 = vpop.f32.mrb[0].mxu0
      %695 = vmatprep.mubr.f32.mxu0 0.0
      %696 = vmatmul.mubr.f32.gmra.mrb[0].mxu0 %v370
      %v697 = vpop.f32.mrb[0].mxu0
      %v698 = vadd.f32 0.0, %v697
      %v699 = vpop.f32.mrb[0].mxu0
      %700 = vmatprep.mubr.f32.mxu0 0.0
      %701 = vmatmul.mubr.f32.gmra.mrb[0].mxu0 %v373
      %v702 = vpop.f32.mrb[0].mxu0
      %v703 = vadd.f32 0.0, %v702
      %v704 = vpop.f32.mrb[0].mxu0
      %705 = vmatprep.mubr.f32.mxu0 0.0
      %706 = vmatmul.mubr.f32.gmra.mrb[0].mxu0 %v376
      %v707 = vpop.f32.mrb[0].mxu0
      %v708 = vadd.f32 0.0, %v707
      %v709 = vpop.f32.mrb[0].mxu0
      %710 = vmatprep.mubr.f32.mxu0 0.0
      %711 = vmatmul.mubr.f32.gmra.mrb[0].mxu0 %v379
      %v712 = vpop.f32.mrb[0].mxu0
      %v713 = vadd.f32 0.0, %v712
      %v714 = vpop.f32.mrb[0].mxu0
      %715 = vmatprep.mubr.f32.mxu0 0.0
      %716 = vmatmul.mubr.f32.gmra.mrb[0].mxu0 %v382
      %v717 = vpop.f32.mrb[0].mxu0
      %v718 = vadd.f32 0.0, %v717
      %v719 = vpop.f32.mrb[0].mxu0
      %720 = vmatprep.mubr.f32.mxu0 0.0
      %721 = vmatmul.mubr.f32.gmra.mrb[0].mxu0 %v385
      %v722 = vpop.f32.mrb[0].mxu0
      %v723 = vadd.f32 0.0, %v722
      %v724 = vpop.f32.mrb[0].mxu0
      %725 = vmatprep.mubr.f32.mxu0 0.0
      %726 = vmatmul.mubr.f32.gmra.mrb[0].mxu0 %v388
      %v727 = vpop.f32.mrb[0].mxu0
      %v728 = vadd.f32 0.0, %v727
      %v729 = vpop.f32.mrb[0].mxu0
      %730 = vmatprep.mubr.f32.mxu0 0.0
      %731 = vmatmul.mubr.f32.gmra.mrb[0].mxu0 %v391
      %v732 = vpop.f32.mrb[0].mxu0
      %v733 = vadd.f32 0.0, %v732
      %v734 = vpop.f32.mrb[0].mxu0
      %735 = vmatprep.mubr.f32.mxu0 0.0
      %736 = vmatmul.mubr.f32.gmra.mrb[0].mxu0 %v394
      %v737 = vpop.f32.mrb[0].mxu0
      %v738 = vadd.f32 0.0, %v737
      %v739 = vpop.f32.mrb[0].mxu0
      %740 = vmatprep.mubr.f32.mxu0 0.0
      %741 = vmatmul.mubr.f32.gmra.mrb[0].mxu0 %v397
      %v742 = vpop.f32.mrb[0].mxu0
      %v743 = vadd.f32 0.0, %v742
      %v744 = vpop.f32.mrb[0].mxu0
      %745 = vmatprep.mubr.f32.mxu0 0.0
      %746 = vmatmul.mubr.f32.gmra.mrb[0].mxu0 %v400
      %v747 = vpop.f32.mrb[0].mxu0
      %v748 = vadd.f32 0.0, %v747
      %v749 = vpop.f32.mrb[0].mxu0
      %750 = vmatprep.mubr.f32.mxu0 0.0
      %751 = vmatmul.mubr.f32.gmra.mrb[0].mxu0 %v403
      %v752 = vpop.f32.mrb[0].mxu0
      %v753 = vadd.f32 0.0, %v752
      %v754 = vpop.f32.mrb[0].mxu0
      %755 = vmatprep.mubr.f32.mxu0 0.0
      %756 = vmatmul.mubr.f32.gmra.mrb[0].mxu0 %v406
      %v757 = vpop.f32.mrb[0].mxu0
      %v758 = vadd.f32 0.0, %v757
      %v759 = vpop.f32.mrb[0].mxu0
      %760 = vmatprep.mubr.f32.mxu0 0.0
      %761 = vmatmul.mubr.f32.gmra.mrb[0].mxu0 %v409
      %v762 = vpop.f32.mrb[0].mxu0
      %v763 = vadd.f32 0.0, %v762
      %v764 = vpop.f32.mrb[0].mxu0
      %765 = vmatprep.mubr.f32.mxu0 0.0
      %766 = vmatmul.mubr.f32.gmra.mrb[0].mxu0 %v412
      %v767 = vpop.f32.mrb[0].mxu0
      %v768 = vadd.f32 0.0, %v767
      %v769 = vpop.f32.mrb[0].mxu0
      %770 = vmatprep.mubr.f32.mxu0 0.0
      %771 = vmatmul.mubr.f32.gmra.mrb[0].mxu0 %v415
      %v772 = vpop.f32.mrb[0].mxu0
      %v773 = vadd.f32 0.0, %v772
      %v774 = vpop.f32.mrb[0].mxu0
      %775 = vmatprep.mubr.f32.mxu0 0.0
      %776 = vmatmul.mubr.f32.gmra.mrb[0].mxu0 %v418
      %v777 = vpop.f32.mrb[0].mxu0
      %v778 = vadd.f32 0.0, %v777
      %v779 = vpop.f32.mrb[0].mxu0
      %780 = vmatprep.mubr.f32.mxu0 0.0
      %781 = vmatmul.mubr.f32.gmra.mrb[0].mxu0 %v421
      %v782 = vpop.f32.mrb[0].mxu0
      %v783 = vadd.f32 0.0, %v782
      %v784 = vpop.f32.mrb[0].mxu0
      %785 = vmatprep.mubr.f32.mxu0 0.0
      %786 = vmatmul.mubr.f32.gmra.mrb[0].mxu0 %v424
      %v787 = vpop.f32.mrb[0].mxu0
      %v788 = vadd.f32 0.0, %v787
      %v789 = vpop.f32.mrb[0].mxu0
      %790 = vmatprep.mubr.f32.mxu0 0.0
      %791 = vmatmul.mubr.f32.gmra.mrb[0].mxu0 %v427
      %v792 = vpop.f32.mrb[0].mxu0
      %v793 = vadd.f32 0.0, %v792
      %v794 = vpop.f32.mrb[0].mxu0
      %795 = vmatprep.mubr.f32.mxu0 0.0
      %796 = vmatmul.mubr.f32.gmra.mrb[0].mxu0 %v430
      %v797 = vpop.f32.mrb[0].mxu0
      %v798 = vadd.f32 0.0, %v797
      %v799 = vpop.f32.mrb[0].mxu0
      %800 = vmatprep.mubr.f32.mxu0 0.0
      %801 = vmatmul.mubr.f32.gmra.mrb[0].mxu0 %v433
      %v802 = vpop.f32.mrb[0].mxu0
      %v803 = vadd.f32 0.0, %v802
      %v804 = vpop.f32.mrb[0].mxu0
      %805 = vmatprep.mubr.f32.mxu0 0.0
      %806 = vmatmul.mubr.f32.gmra.mrb[0].mxu0 %v436
      %v807 = vpop.f32.mrb[0].mxu0
      %v808 = vadd.f32 0.0, %v807
      %v809 = vpop.f32.mrb[0].mxu0
      %810 = vmatprep.mubr.f32.mxu0 0.0
      %811 = vmatmul.mubr.f32.gmra.mrb[0].mxu0 %v439
      %v812 = vpop.f32.mrb[0].mxu0
      %v813 = vadd.f32 0.0, %v812
      %v814 = vpop.f32.mrb[0].mxu0
      %815 = vmatprep.mubr.f32.mxu0 0.0
      %816 = vmatmul.mubr.f32.gmra.mrb[0].mxu0 %v442
      %v817 = vpop.f32.mrb[0].mxu0
      %v818 = vadd.f32 0.0, %v817
      %v819 = vpop.f32.mrb[0].mxu0
      %820 = vmatprep.mubr.f32.mxu0 0.0
      %821 = vmatmul.mubr.f32.gmra.mrb[0].mxu0 %v445
      %v822 = vpop.f32.mrb[0].mxu0
      %v823 = vadd.f32 0.0, %v822
      %v824 = vpop.f32.mrb[0].mxu0
      %825 = vmatprep.mubr.f32.mxu0 0.0
      %826 = vmatmul.mubr.f32.gmra.mrb[0].mxu0 %v448
      %v827 = vpop.f32.mrb[0].mxu0
      %v828 = vadd.f32 0.0, %v827
      %v829 = vpop.f32.mrb[0].mxu0
      %830 = vmatprep.mubr.f32.mxu0 0.0
      %831 = vmatmul.mubr.f32.gmra.mrb[0].mxu0 %v451
      %v832 = vpop.f32.mrb[0].mxu0
      %v833 = vadd.f32 0.0, %v832
      %v834 = vpop.f32.mrb[0].mxu0
      %835 = vmatprep.mubr.f32.mxu0 0.0
      %836 = vmatmul.mubr.f32.gmra.mrb[0].mxu0 %v454
      %v837 = vpop.f32.mrb[0].mxu0
      %v838 = vadd.f32 0.0, %v837
      %v839 = vpop.f32.mrb[0].mxu0
      %840 = vdwg.mxu0
      %vm841 = vcmask 72704
      %842 = vst.msk [vmem:[%s188] sm:$0xff] %vm841, %v523
      %843 = vst.msk [vmem:[%s188 + $0x8] sm:$0xff] %vm841, %v528
      %844 = vst.msk [vmem:[%s188 + $0x10] sm:$0xff] %vm841, %v533
      %845 = vst.msk [vmem:[%s188 + $0x18] sm:$0xff] %vm841, %v538
      %846 = vst.msk [vmem:[%s188 + $0x20] sm:$0xff] %vm841, %v543
      %847 = vst.msk [vmem:[%s188 + $0x28] sm:$0xff] %vm841, %v548
      %848 = vst.msk [vmem:[%s188 + $0x30] sm:$0xff] %vm841, %v553
      %849 = vst.msk [vmem:[%s188 + $0x38] sm:$0xff] %vm841, %v558
      %850 = vst.msk [vmem:[%s188 + $0x40] sm:$0xff] %vm841, %v563
      %851 = vst.msk [vmem:[%s188 + $0x48] sm:$0xff] %vm841, %v568
      %852 = vst.msk [vmem:[%s188 + $0x50] sm:$0xff] %vm841, %v573
      %853 = vst.msk [vmem:[%s188 + $0x58] sm:$0xff] %vm841, %v578
      %854 = vst.msk [vmem:[%s188 + $0x60] sm:$0xff] %vm841, %v583
      %855 = vst.msk [vmem:[%s188 + $0x68] sm:$0xff] %vm841, %v588
      %856 = vst.msk [vmem:[%s188 + $0x70] sm:$0xff] %vm841, %v593
      %857 = vst.msk [vmem:[%s188 + $0x78] sm:$0xff] %vm841, %v598
      %858 = vst.msk [vmem:[%s188 + $0x80] sm:$0xff] %vm841, %v603
      %859 = vst.msk [vmem:[%s188 + $0x88] sm:$0xff] %vm841, %v608
      %860 = vst.msk [vmem:[%s188 + $0x90] sm:$0xff] %vm841, %v613
      %861 = vst.msk [vmem:[%s188 + $0x98] sm:$0xff] %vm841, %v618
      %862 = vst.msk [vmem:[%s188 + $0xa0] sm:$0xff] %vm841, %v623
      %863 = vst.msk [vmem:[%s188 + $0xa8] sm:$0xff] %vm841, %v628
      %864 = vst.msk [vmem:[%s188 + $0xb0] sm:$0xff] %vm841, %v633
      %865 = vst.msk [vmem:[%s188 + $0xb8] sm:$0xff] %vm841, %v638
      %866 = vst.msk [vmem:[%s188 + $0xc0] sm:$0xff] %vm841, %v643
      %867 = vst.msk [vmem:[%s188 + $0xc8] sm:$0xff] %vm841, %v648
      %868 = vst.msk [vmem:[%s188 + $0xd0] sm:$0xff] %vm841, %v653
      %869 = vst.msk [vmem:[%s188 + $0xd8] sm:$0xff] %vm841, %v658
      %870 = vst.msk [vmem:[%s188 + $0xe0] sm:$0xff] %vm841, %v663
      %871 = vst.msk [vmem:[%s188 + $0xe8] sm:$0xff] %vm841, %v668
      %872 = vst.msk [vmem:[%s188 + $0xf0] sm:$0xff] %vm841, %v673
      %873 = vst.msk [vmem:[%s188 + $0xf8] sm:$0xff] %vm841, %v678
      %874 = vst.msk [vmem:[%s188 + $0x100] sm:$0xff] %vm841, %v683
      %875 = vst.msk [vmem:[%s188 + $0x108] sm:$0xff] %vm841, %v688
      %876 = vst.msk [vmem:[%s188 + $0x110] sm:$0xff] %vm841, %v693
      %877 = vst.msk [vmem:[%s188 + $0x118] sm:$0xff] %vm841, %v698
      %878 = vst.msk [vmem:[%s188 + $0x120] sm:$0xff] %vm841, %v703
      %879 = vst.msk [vmem:[%s188 + $0x128] sm:$0xff] %vm841, %v708
      %880 = vst.msk [vmem:[%s188 + $0x130] sm:$0xff] %vm841, %v713
      %881 = vst.msk [vmem:[%s188 + $0x138] sm:$0xff] %vm841, %v718
      %882 = vst.msk [vmem:[%s188 + $0x140] sm:$0xff] %vm841, %v723
      %883 = vst.msk [vmem:[%s188 + $0x148] sm:$0xff] %vm841, %v728
      %884 = vst.msk [vmem:[%s188 + $0x150] sm:$0xff] %vm841, %v733
      %885 = vst.msk [vmem:[%s188 + $0x158] sm:$0xff] %vm841, %v738
      %886 = vst.msk [vmem:[%s188 + $0x160] sm:$0xff] %vm841, %v743
      %887 = vst.msk [vmem:[%s188 + $0x168] sm:$0xff] %vm841, %v748
      %888 = vst.msk [vmem:[%s188 + $0x170] sm:$0xff] %vm841, %v753
      %889 = vst.msk [vmem:[%s188 + $0x178] sm:$0xff] %vm841, %v758
      %890 = vst.msk [vmem:[%s188 + $0x180] sm:$0xff] %vm841, %v763
      %891 = vst.msk [vmem:[%s188 + $0x188] sm:$0xff] %vm841, %v768
      %892 = vst.msk [vmem:[%s188 + $0x190] sm:$0xff] %vm841, %v773
      %893 = vst.msk [vmem:[%s188 + $0x198] sm:$0xff] %vm841, %v778
      %894 = vst.msk [vmem:[%s188 + $0x1a0] sm:$0xff] %vm841, %v783
      %895 = vst.msk [vmem:[%s188 + $0x1a8] sm:$0xff] %vm841, %v788
      %896 = vst.msk [vmem:[%s188 + $0x1b0] sm:$0xff] %vm841, %v793
      %897 = vst.msk [vmem:[%s188 + $0x1b8] sm:$0xff] %vm841, %v798
      %898 = vst.msk [vmem:[%s188 + $0x1c0] sm:$0xff] %vm841, %v803
      %899 = vst.msk [vmem:[%s188 + $0x1c8] sm:$0xff] %vm841, %v808
      %900 = vst.msk [vmem:[%s188 + $0x1d0] sm:$0xff] %vm841, %v813
      %901 = vst.msk [vmem:[%s188 + $0x1d8] sm:$0xff] %vm841, %v818
      %902 = vst.msk [vmem:[%s188 + $0x1e0] sm:$0xff] %vm841, %v823
      %903 = vst.msk [vmem:[%s188 + $0x1e8] sm:$0xff] %vm841, %v828
      %904 = vst.msk [vmem:[%s188 + $0x1f0] sm:$0xff] %vm841, %v833
      %905 = vst.msk [vmem:[%s188 + $0x1f8] sm:$0xff] %vm841, %v838
      %s906 = smul.u32 8, %s17
      %s907 = smul.u32 8, %s18
      %p908 = scmp.lt.s32.totalorder %s906, 15
      %s909 = scalar_select %p908, %s906, 15
      %p910 = scmp.lt.s32.totalorder %s907, 7
      %s911 = scalar_select %p910, %s907, 7
      %s912 = smul.addr %s909, 8
      %s913 = sadd.s32 %s911, %s912
      %s914 = smul.addr %s913, 8
      %s915 = scalar_lea.vmem %s2, %s914
      // Predicated region
      $region29: #{chgc_forward.2} parent=27 // pred_check
        %p916 = pneg %p94
      $region30: #{chgc_forward.2} parent=27 // pred_check_branch
        %918 = sbr.rel (%p916) target = $region32
      $region31: #{chgc_forward.2} parent=27 // pred_region
        %s919 = smul.u32 8, %s17
        %s920 = smul.u32 8, %s18
      $region32: #{chgc_forward.2} parent=27 // pred_fallthru
        _
    $region28: #{chgc_forward.2} parent=5 // pred_fallthru
      _
    %p921 = scmp.le.s32.totalorder 2, %s8
    // Predicated region
    $region33: #{chgc_forward.2} parent=5 // pred_check
      %p922 = pneg %p921
    $region34: #{chgc_forward.2} parent=5 // pred_check_branch
      %924 = sbr.rel (%p922) target = $region36
    $region35: #{chgc_forward.2} parent=5 // pred_region
      %s925 = ssub.s32 %s8, 2
      // Predicated region
      $region37: #{chgc_forward.2} parent=35 // pred_check
        %p926 = pneg %p100
      $region38: #{chgc_forward.2} parent=35 // pred_check_branch
        %928 = sbr.rel (%p926) target = $region40
      $region39: #{chgc_forward.2} parent=35 // pred_region
        %s929 = smul.u32 8, %s19
        %s930 = smul.u32 8, %s20
        %p931 = scmp.lt.s32.totalorder %s929, 15
        %s932 = scalar_select %p931, %s929, 15
        %p933 = scmp.lt.s32.totalorder %s930, 7
        %s934 = scalar_select %p933, %s930, 7
        %s935 = smul.addr %s932, 8
        %s936 = sadd.s32 %s934, %s935
        %s937 = smul.addr %s936, 8
        %s938 = scalar_lea.vmem %s2, %s937
      $region40: #{chgc_forward.2} parent=35 // pred_fallthru
        _
    $region36: #{chgc_forward.2} parent=5 // pred_fallthru
      _
  $region6: #{chgc_forward.2} parent=0 // loop_footer
    %s12 = sadd.s32 1, %s8
  $region7: #{chgc_forward.2} parent=0 // loop_footer_branch
    %7 = sbr.rel target = $region3
  $region8: #{chgc_forward.2} parent=0 // loop_exit
    _

// kernel: chgc_forward.3
$region0: #{chgc_forward.3}
  #allocation0 [shape = 'u32[]', space=smem, size = 0x4, offset = 0x4, fixed_abs, tag = 'smem constant byte address 0x4 - core index']
  #allocation1 [shape = 'u32[144,128]{1,0:T(1,128)}', space=vmem, size = 0x12000, scoped, tag = 'internal scratch']
  %s0 = inlined_call_operand.vmem [shape: f32[16,64,64], index: 0, kind: input, shape index: {}]
  %s1 = inlined_call_operand.vmem [shape: f32[16,64,1], index: 1, kind: input, shape index: {}]
  %s2 = inlined_call_operand.vmem [shape: f32[16,64,64], index: 2, kind: output, shape index: {}]
  %s3 = sld [smem:[#allocation0]]
  $region41: #{chgc_forward.3} parent=0
    _
  %s5 = ssub.s32 1, %s3
  %s6 = scalar_select 0, %s5, %s3
  loop: start=0, step=1, limit=4
  $region2: #{chgc_forward.3} parent=0 // loop_pre_header
    _
  $region3: #{chgc_forward.3} parent=0 // loop_header
    %s8 = sphi 0, %s12
    %p9 = scmp.ge.s32.totalorder %s8, 4
    %s15 = sphi 0, %s27
    %s16 = sphi 0, %s23
    %s17 = sphi 0, %s15
    %s18 = sphi 0, %s16
    %s19 = sphi 0, %s17
    %s20 = sphi 0, %s18
    %s32 = sphi 0, %s34
    %s35 = sphi 0, %s32
    %s36 = sphi 0, %s35
    %s52 = sphi 0, %s36
    %s60 = sphi 0, %s62
    %s63 = sphi 0, %s60
    %s64 = sphi 0, %s63
    %s80 = sphi 0, %s64
    %s88 = sphi 0, %s90
    %s91 = sphi 0, %s88
    %s92 = sphi 0, %s91
    %s108 = sphi 0, %s92
  $region4: #{chgc_forward.3} parent=0 // loop_header_branch
    %11 = sbr.rel (%p9) target = $region8
  $region5: #{chgc_forward.3} parent=0 // loop_body
    %s13 = ssub.s32 %s8, 1
    %s14 = ssub.s32 %s8, 2
    %s21 = sadd.s32 1, %s16
    %p22 = scmp.ge.s32.totalorder %s21, 1
    %s23 = scalar_select %p22, 0, %s21
    %s24 = sadd.s32 1, %s15
    %s25 = scalar_select %p22, %s24, %s15
    %p26 = scmp.ge.s32.totalorder %s25, 2
    %s27 = scalar_select %p26, 0, %s25
    %s28 = ssub.s32 %s15, %s27
    %s29 = ssub.s32 %s16, %s23
    %s30 = sor.u32 %s28, %s29
    %p31 = scmp.eq.s32.totalorder %s30, 0
    %s33 = sadd.s32 %s32, 1
    %s34 = scalar_select %p31, %s32, %s33
    %p37 = pneg %p31
    %p38 = scmp.eq.s32.totalorder %s8, 1
    %p39 = por %p37, %p38
    %p40 = scmp.ne.s32.totalorder %s32, %s35
    %p41 = scmp.eq.s32.totalorder %s8, 0
    %p42 = por %p40, %p41
    %p43 = scmp.ne.s32.totalorder %s32, %s35
    %p44 = scmp.eq.s32.totalorder %s13, 1
    %p45 = por %p43, %p44
    %p46 = scmp.ne.s32.totalorder %s35, %s36
    %p47 = scmp.eq.s32.totalorder %s13, 0
    %p48 = por %p46, %p47
    %p49 = scmp.ne.s32.totalorder %s35, %s36
    %p50 = scmp.eq.s32.totalorder %s14, 1
    %p51 = por %p49, %p50
    %p53 = scmp.ne.s32.totalorder %s36, %s52
    %p54 = scmp.eq.s32.totalorder %s14, 0
    %p55 = por %p53, %p54
    %s56 = ssub.s32 %s15, %s27
    %s57 = ssub.s32 %s16, %s23
    %s58 = sor.u32 %s56, %s57
    %p59 = scmp.eq.s32.totalorder %s58, 0
    %s61 = sadd.s32 %s60, 1
    %s62 = scalar_select %p59, %s60, %s61
    %p65 = pneg %p59
    %p66 = scmp.eq.s32.totalorder %s8, 1
    %p67 = por %p65, %p66
    %p68 = scmp.ne.s32.totalorder %s60, %s63
    %p69 = scmp.eq.s32.totalorder %s8, 0
    %p70 = por %p68, %p69
    %p71 = scmp.ne.s32.totalorder %s60, %s63
    %p72 = scmp.eq.s32.totalorder %s13, 1
    %p73 = por %p71, %p72
    %p74 = scmp.ne.s32.totalorder %s63, %s64
    %p75 = scmp.eq.s32.totalorder %s13, 0
    %p76 = por %p74, %p75
    %p77 = scmp.ne.s32.totalorder %s63, %s64
    %p78 = scmp.eq.s32.totalorder %s14, 1
    %p79 = por %p77, %p78
    %p81 = scmp.ne.s32.totalorder %s64, %s80
    %p82 = scmp.eq.s32.totalorder %s14, 0
    %p83 = por %p81, %p82
    %s84 = ssub.s32 %s15, %s27
    %s85 = ssub.s32 %s16, %s23
    %s86 = sor.u32 %s84, %s85
    %p87 = scmp.eq.s32.totalorder %s86, 0
    %s89 = sadd.s32 %s88, 1
    %s90 = scalar_select %p87, %s88, %s89
    %p93 = pneg %p87
    %p94 = scmp.eq.s32.totalorder %s8, 1
    %p95 = por %p93, %p94
    %p96 = scmp.ne.s32.totalorder %s88, %s91
    %p97 = scmp.eq.s32.totalorder %s8, 0
    %p98 = por %p96, %p97
    %p99 = scmp.ne.s32.totalorder %s88, %s91
    %p100 = scmp.eq.s32.totalorder %s13, 1
    %p101 = por %p99, %p100
    %p102 = scmp.ne.s32.totalorder %s91, %s92
    %p103 = scmp.eq.s32.totalorder %s13, 0
    %p104 = por %p102, %p103
    %p105 = scmp.ne.s32.totalorder %s91, %s92
    %p106 = scmp.eq.s32.totalorder %s14, 1
    %p107 = por %p105, %p106
    %p109 = scmp.ne.s32.totalorder %s92, %s108
    %p110 = scmp.eq.s32.totalorder %s14, 0
    %p111 = por %p109, %p110
    %p112 = scmp.le.s32.totalorder 1, %s8
    %p113 = scmp.lt.s32.totalorder %s8, 3
    %p114 = pnand %p112, %p113
    %p115 = pneg %p114
    // Predicated region
    $region9: #{chgc_forward.3} parent=5 // pred_check
      _
    $region10: #{chgc_forward.3} parent=5 // pred_check_branch
      %117 = sbr.rel (%p114) target = $region12
    $region11: #{chgc_forward.3} parent=5 // pred_region
      %s118 = ssub.s32 %s8, 1
    $region12: #{chgc_forward.3} parent=5 // pred_fallthru
      _
    %p119 = scmp.lt.s32.totalorder %s8, 2
    // Predicated region
    $region13: #{chgc_forward.3} parent=5 // pred_check
      %p120 = pneg %p119
    $region14: #{chgc_forward.3} parent=5 // pred_check_branch
      %122 = sbr.rel (%p120) target = $region16
    $region15: #{chgc_forward.3} parent=5 // pred_region
      // Predicated region
      $region17: #{chgc_forward.3} parent=15 // pred_check
        %p123 = pneg %p42
      $region18: #{chgc_forward.3} parent=15 // pred_check_branch
        %125 = sbr.rel (%p123) target = $region20
      $region19: #{chgc_forward.3} parent=15 // pred_region
        %s126 = smul.u32 8, %s15
        %s127 = smul.u32 8, %s16
        %p128 = scmp.lt.s32.totalorder %s126, 15
        %s129 = scalar_select %p128, %s126, 15
        %p130 = scmp.lt.s32.totalorder %s127, 7
        %s131 = scalar_select %p130, %s127, 7
        %s132 = smul.addr %s129, 8
        %s133 = sadd.s32 %s131, %s132
        %s134 = smul.addr %s133, 8
        %s135 = scalar_lea.vmem %s0, %s134
        %s136 = smul.u32 8, %s15
        %s137 = smul.u32 8, %s16
      $region20: #{chgc_forward.3} parent=15 // pred_fallthru
        _
      // Predicated region
      $region21: #{chgc_forward.3} parent=15 // pred_check
        %p138 = pneg %p70
      $region22: #{chgc_forward.3} parent=15 // pred_check_branch
        %140 = sbr.rel (%p138) target = $region24
      $region23: #{chgc_forward.3} parent=15 // pred_region
        %s141 = smul.u32 8, %s15
        %s142 = smul.u32 8, %s16
        %p143 = scmp.lt.s32.totalorder %s141, 15
        %s144 = scalar_select %p143, %s141, 15
        %p145 = scmp.lt.s32.totalorder %s142, 7
        %s146 = scalar_select %p145, %s142, 7
        %s147 = smul.addr %s144, 8
        %s148 = sadd.s32 %s146, %s147
        %s149 = smul.addr %s148, 8
        %s150 = scalar_lea.vmem %s1, %s149
        %s151 = smul.u32 8, %s15
        %s152 = smul.u32 8, %s16
      $region24: #{chgc_forward.3} parent=15 // pred_fallthru
        _
    $region16: #{chgc_forward.3} parent=5 // pred_fallthru
      _
    %p153 = scmp.le.s32.totalorder 1, %s8
    %p154 = scmp.lt.s32.totalorder %s8, 3
    %p155 = pnand %p153, %p154
    %p156 = pneg %p155
    // Predicated region
    $region25: #{chgc_forward.3} parent=5 // pred_check
      _
    $region26: #{chgc_forward.3} parent=5 // pred_check_branch
      %158 = sbr.rel (%p155) target = $region28
    $region27: #{chgc_forward.3} parent=5 // pred_region
      %s159 = ssub.s32 %s8, 1
      %s160 = smul.u32 8, %s17
      %s161 = smul.u32 8, %s18
      %p162 = scmp.lt.s32.totalorder %s160, 15
      %s163 = scalar_select %p162, %s160, 15
      %p164 = scmp.lt.s32.totalorder %s161, 7
      %s165 = scalar_select %p164, %s161, 7
      %s166 = smul.addr %s163, 8
      %s167 = sadd.s32 %s165, %s166
      %s168 = smul.addr %s167, 8
      %s169 = scalar_lea.vmem %s0, %s168
      %p170 = pneg %p48
      %p171 = pneg %p45
      %s172 = smul.u32 8, %s17
      %s173 = smul.u32 8, %s18
      %p174 = scmp.lt.s32.totalorder %s172, 15
      %s175 = scalar_select %p174, %s172, 15
      %p176 = scmp.lt.s32.totalorder %s173, 7
      %s177 = scalar_select %p176, %s173, 7
      %s178 = smul.addr %s175, 8
      %s179 = sadd.s32 %s177, %s178
      %s180 = smul.addr %s179, 8
      %s181 = scalar_lea.vmem %s1, %s180
      %p182 = pneg %p76
      %p183 = pneg %p73
      %p184 = pneg %p104
      %p185 = pneg %p101
      %s186 = smul.u32 8, %s17
      %s187 = smul.u32 8, %s18
      %p188 = scmp.lt.s32.totalorder %s186, 15
      %s189 = scalar_select %p188, %s186, 15
      %p190 = scmp.lt.s32.totalorder %s187, 7
      %s191 = scalar_select %p190, %s187, 7
      %s192 = smul.addr %s189, 8
      %s193 = sadd.s32 %s191, %s192
      %s194 = smul.addr %s193, 8
      %s195 = scalar_lea.vmem %s2, %s194
      %s196 = smul.u32 8, %s17
      %s197 = smul.u32 8, %s18
      %p198 = scmp.lt.s32.totalorder %s196, 15
      %s199 = scalar_select %p198, %s196, 15
      %p200 = scmp.lt.s32.totalorder %s197, 7
      %s201 = scalar_select %p200, %s197, 7
      %s202 = smul.addr %s199, 8
      %s203 = sadd.s32 %s201, %s202
      %s204 = smul.addr %s203, 8
      %s205 = scalar_lea.vmem %s0, %s204
      %s206 = smul.u32 8, %s17
      %s207 = smul.u32 8, %s18
      %s208 = smul.u32 8, %s17
      %s209 = smul.u32 8, %s18
      %p210 = scmp.lt.s32.totalorder %s208, 15
      %s211 = scalar_select %p210, %s208, 15
      %p212 = scmp.lt.s32.totalorder %s209, 7
      %s213 = scalar_select %p212, %s209, 7
      %s214 = smul.addr %s211, 8
      %s215 = sadd.s32 %s213, %s214
      %s216 = smul.addr %s215, 8
      %s217 = scalar_lea.vmem %s1, %s216
      %s218 = smul.u32 8, %s17
      %s219 = smul.u32 8, %s18
      %s220 = smul.u32 8, %s17
      %s221 = smul.u32 8, %s18
      %p222 = scmp.lt.s32.totalorder %s220, 15
      %s223 = scalar_select %p222, %s220, 15
      %p224 = scmp.lt.s32.totalorder %s221, 7
      %s225 = scalar_select %p224, %s221, 7
      %s226 = smul.addr %s223, 8
      %s227 = sadd.s32 %s225, %s226
      %s228 = smul.addr %s227, 8
      %s229 = scalar_lea.vmem %s2, %s228
      %s230 = smul.u32 8, %s17
      %s231 = smul.u32 8, %s18
      %v232 = vld [vmem:[%s205] sm:$0xff]
      %v233 = vld [vmem:[%s205 + $0x8] sm:$0xff]
      %v234 = vld [vmem:[%s205 + $0x10] sm:$0xff]
      %v235 = vld [vmem:[%s205 + $0x18] sm:$0xff]
      %v236 = vld [vmem:[%s205 + $0x20] sm:$0xff]
      %v237 = vld [vmem:[%s205 + $0x28] sm:$0xff]
      %v238 = vld [vmem:[%s205 + $0x30] sm:$0xff]
      %v239 = vld [vmem:[%s205 + $0x38] sm:$0xff]
      %v240 = vld [vmem:[%s205 + $0x40] sm:$0xff]
      %v241 = vld [vmem:[%s205 + $0x48] sm:$0xff]
      %v242 = vld [vmem:[%s205 + $0x50] sm:$0xff]
      %v243 = vld [vmem:[%s205 + $0x58] sm:$0xff]
      %v244 = vld [vmem:[%s205 + $0x60] sm:$0xff]
      %v245 = vld [vmem:[%s205 + $0x68] sm:$0xff]
      %v246 = vld [vmem:[%s205 + $0x70] sm:$0xff]
      %v247 = vld [vmem:[%s205 + $0x78] sm:$0xff]
      %v248 = vld [vmem:[%s205 + $0x80] sm:$0xff]
      %v249 = vld [vmem:[%s205 + $0x88] sm:$0xff]
      %v250 = vld [vmem:[%s205 + $0x90] sm:$0xff]
      %v251 = vld [vmem:[%s205 + $0x98] sm:$0xff]
      %v252 = vld [vmem:[%s205 + $0xa0] sm:$0xff]
      %v253 = vld [vmem:[%s205 + $0xa8] sm:$0xff]
      %v254 = vld [vmem:[%s205 + $0xb0] sm:$0xff]
      %v255 = vld [vmem:[%s205 + $0xb8] sm:$0xff]
      %v256 = vld [vmem:[%s205 + $0xc0] sm:$0xff]
      %v257 = vld [vmem:[%s205 + $0xc8] sm:$0xff]
      %v258 = vld [vmem:[%s205 + $0xd0] sm:$0xff]
      %v259 = vld [vmem:[%s205 + $0xd8] sm:$0xff]
      %v260 = vld [vmem:[%s205 + $0xe0] sm:$0xff]
      %v261 = vld [vmem:[%s205 + $0xe8] sm:$0xff]
      %v262 = vld [vmem:[%s205 + $0xf0] sm:$0xff]
      %v263 = vld [vmem:[%s205 + $0xf8] sm:$0xff]
      %v264 = vld [vmem:[%s205 + $0x100] sm:$0xff]
      %v265 = vld [vmem:[%s205 + $0x108] sm:$0xff]
      %v266 = vld [vmem:[%s205 + $0x110] sm:$0xff]
      %v267 = vld [vmem:[%s205 + $0x118] sm:$0xff]
      %v268 = vld [vmem:[%s205 + $0x120] sm:$0xff]
      %v269 = vld [vmem:[%s205 + $0x128] sm:$0xff]
      %v270 = vld [vmem:[%s205 + $0x130] sm:$0xff]
      %v271 = vld [vmem:[%s205 + $0x138] sm:$0xff]
      %v272 = vld [vmem:[%s205 + $0x140] sm:$0xff]
      %v273 = vld [vmem:[%s205 + $0x148] sm:$0xff]
      %v274 = vld [vmem:[%s205 + $0x150] sm:$0xff]
      %v275 = vld [vmem:[%s205 + $0x158] sm:$0xff]
      %v276 = vld [vmem:[%s205 + $0x160] sm:$0xff]
      %v277 = vld [vmem:[%s205 + $0x168] sm:$0xff]
      %v278 = vld [vmem:[%s205 + $0x170] sm:$0xff]
      %v279 = vld [vmem:[%s205 + $0x178] sm:$0xff]
      %v280 = vld [vmem:[%s205 + $0x180] sm:$0xff]
      %v281 = vld [vmem:[%s205 + $0x188] sm:$0xff]
      %v282 = vld [vmem:[%s205 + $0x190] sm:$0xff]
      %v283 = vld [vmem:[%s205 + $0x198] sm:$0xff]
      %v284 = vld [vmem:[%s205 + $0x1a0] sm:$0xff]
      %v285 = vld [vmem:[%s205 + $0x1a8] sm:$0xff]
      %v286 = vld [vmem:[%s205 + $0x1b0] sm:$0xff]
      %v287 = vld [vmem:[%s205 + $0x1b8] sm:$0xff]
      %v288 = vld [vmem:[%s205 + $0x1c0] sm:$0xff]
      %v289 = vld [vmem:[%s205 + $0x1c8] sm:$0xff]
      %v290 = vld [vmem:[%s205 + $0x1d0] sm:$0xff]
      %v291 = vld [vmem:[%s205 + $0x1d8] sm:$0xff]
      %v292 = vld [vmem:[%s205 + $0x1e0] sm:$0xff]
      %v293 = vld [vmem:[%s205 + $0x1e8] sm:$0xff]
      %v294 = vld [vmem:[%s205 + $0x1f0] sm:$0xff]
      %v295 = vld [vmem:[%s205 + $0x1f8] sm:$0xff]
      %v296 = vld [vmem:[%s217] sm:$0xff]
      %v297 = vld [vmem:[%s217 + $0x8] sm:$0xff]
      %v298 = vld [vmem:[%s217 + $0x10] sm:$0xff]
      %v299 = vld [vmem:[%s217 + $0x18] sm:$0xff]
      %v300 = vld [vmem:[%s217 + $0x20] sm:$0xff]
      %v301 = vld [vmem:[%s217 + $0x28] sm:$0xff]
      %v302 = vld [vmem:[%s217 + $0x30] sm:$0xff]
      %v303 = vld [vmem:[%s217 + $0x38] sm:$0xff]
      %v304 = vld [vmem:[%s217 + $0x40] sm:$0xff]
      %v305 = vld [vmem:[%s217 + $0x48] sm:$0xff]
      %v306 = vld [vmem:[%s217 + $0x50] sm:$0xff]
      %v307 = vld [vmem:[%s217 + $0x58] sm:$0xff]
      %v308 = vld [vmem:[%s217 + $0x60] sm:$0xff]
      %v309 = vld [vmem:[%s217 + $0x68] sm:$0xff]
      %v310 = vld [vmem:[%s217 + $0x70] sm:$0xff]
      %v311 = vld [vmem:[%s217 + $0x78] sm:$0xff]
      %v312 = vld [vmem:[%s217 + $0x80] sm:$0xff]
      %v313 = vld [vmem:[%s217 + $0x88] sm:$0xff]
      %v314 = vld [vmem:[%s217 + $0x90] sm:$0xff]
      %v315 = vld [vmem:[%s217 + $0x98] sm:$0xff]
      %v316 = vld [vmem:[%s217 + $0xa0] sm:$0xff]
      %v317 = vld [vmem:[%s217 + $0xa8] sm:$0xff]
      %v318 = vld [vmem:[%s217 + $0xb0] sm:$0xff]
      %v319 = vld [vmem:[%s217 + $0xb8] sm:$0xff]
      %v320 = vld [vmem:[%s217 + $0xc0] sm:$0xff]
      %v321 = vld [vmem:[%s217 + $0xc8] sm:$0xff]
      %v322 = vld [vmem:[%s217 + $0xd0] sm:$0xff]
      %v323 = vld [vmem:[%s217 + $0xd8] sm:$0xff]
      %v324 = vld [vmem:[%s217 + $0xe0] sm:$0xff]
      %v325 = vld [vmem:[%s217 + $0xe8] sm:$0xff]
      %v326 = vld [vmem:[%s217 + $0xf0] sm:$0xff]
      %v327 = vld [vmem:[%s217 + $0xf8] sm:$0xff]
      %v328 = vld [vmem:[%s217 + $0x100] sm:$0xff]
      %v329 = vld [vmem:[%s217 + $0x108] sm:$0xff]
      %v330 = vld [vmem:[%s217 + $0x110] sm:$0xff]
      %v331 = vld [vmem:[%s217 + $0x118] sm:$0xff]
      %v332 = vld [vmem:[%s217 + $0x120] sm:$0xff]
      %v333 = vld [vmem:[%s217 + $0x128] sm:$0xff]
      %v334 = vld [vmem:[%s217 + $0x130] sm:$0xff]
      %v335 = vld [vmem:[%s217 + $0x138] sm:$0xff]
      %v336 = vld [vmem:[%s217 + $0x140] sm:$0xff]
      %v337 = vld [vmem:[%s217 + $0x148] sm:$0xff]
      %v338 = vld [vmem:[%s217 + $0x150] sm:$0xff]
      %v339 = vld [vmem:[%s217 + $0x158] sm:$0xff]
      %v340 = vld [vmem:[%s217 + $0x160] sm:$0xff]
      %v341 = vld [vmem:[%s217 + $0x168] sm:$0xff]
      %v342 = vld [vmem:[%s217 + $0x170] sm:$0xff]
      %v343 = vld [vmem:[%s217 + $0x178] sm:$0xff]
      %v344 = vld [vmem:[%s217 + $0x180] sm:$0xff]
      %v345 = vld [vmem:[%s217 + $0x188] sm:$0xff]
      %v346 = vld [vmem:[%s217 + $0x190] sm:$0xff]
      %v347 = vld [vmem:[%s217 + $0x198] sm:$0xff]
      %v348 = vld [vmem:[%s217 + $0x1a0] sm:$0xff]
      %v349 = vld [vmem:[%s217 + $0x1a8] sm:$0xff]
      %v350 = vld [vmem:[%s217 + $0x1b0] sm:$0xff]
      %v351 = vld [vmem:[%s217 + $0x1b8] sm:$0xff]
      %v352 = vld [vmem:[%s217 + $0x1c0] sm:$0xff]
      %v353 = vld [vmem:[%s217 + $0x1c8] sm:$0xff]
      %v354 = vld [vmem:[%s217 + $0x1d0] sm:$0xff]
      %v355 = vld [vmem:[%s217 + $0x1d8] sm:$0xff]
      %v356 = vld [vmem:[%s217 + $0x1e0] sm:$0xff]
      %v357 = vld [vmem:[%s217 + $0x1e8] sm:$0xff]
      %v358 = vld [vmem:[%s217 + $0x1f0] sm:$0xff]
      %v359 = vld [vmem:[%s217 + $0x1f8] sm:$0xff]
      %361 = vset.pattern.permute.xlu0 0
      %362 = vperm.xlu0 %361, %v296
      %v363 = vpop.permute.xlu0 %362
      %366 = vset.pattern.permute.xlu0 0
      %367 = vperm.xlu0 %366, %v297
      %v368 = vpop.permute.xlu0 %367
      %371 = vset.pattern.permute.xlu0 0
      %372 = vperm.xlu0 %371, %v298
      %v373 = vpop.permute.xlu0 %372
      %376 = vset.pattern.permute.xlu0 0
      %377 = vperm.xlu0 %376, %v299
      %v378 = vpop.permute.xlu0 %377
      %381 = vset.pattern.permute.xlu0 0
      %382 = vperm.xlu0 %381, %v300
      %v383 = vpop.permute.xlu0 %382
      %386 = vset.pattern.permute.xlu0 0
      %387 = vperm.xlu0 %386, %v301
      %v388 = vpop.permute.xlu0 %387
      %391 = vset.pattern.permute.xlu0 0
      %392 = vperm.xlu0 %391, %v302
      %v393 = vpop.permute.xlu0 %392
      %396 = vset.pattern.permute.xlu0 0
      %397 = vperm.xlu0 %396, %v303
      %v398 = vpop.permute.xlu0 %397
      %401 = vset.pattern.permute.xlu0 0
      %402 = vperm.xlu0 %401, %v304
      %v403 = vpop.permute.xlu0 %402
      %406 = vset.pattern.permute.xlu0 0
      %407 = vperm.xlu0 %406, %v305
      %v408 = vpop.permute.xlu0 %407
      %411 = vset.pattern.permute.xlu0 0
      %412 = vperm.xlu0 %411, %v306
      %v413 = vpop.permute.xlu0 %412
      %416 = vset.pattern.permute.xlu0 0
      %417 = vperm.xlu0 %416, %v307
      %v418 = vpop.permute.xlu0 %417
      %421 = vset.pattern.permute.xlu0 0
      %422 = vperm.xlu0 %421, %v308
      %v423 = vpop.permute.xlu0 %422
      %426 = vset.pattern.permute.xlu0 0
      %427 = vperm.xlu0 %426, %v309
      %v428 = vpop.permute.xlu0 %427
      %431 = vset.pattern.permute.xlu0 0
      %432 = vperm.xlu0 %431, %v310
      %v433 = vpop.permute.xlu0 %432
      %436 = vset.pattern.permute.xlu0 0
      %437 = vperm.xlu0 %436, %v311
      %v438 = vpop.permute.xlu0 %437
      %441 = vset.pattern.permute.xlu0 0
      %442 = vperm.xlu0 %441, %v312
      %v443 = vpop.permute.xlu0 %442
      %446 = vset.pattern.permute.xlu0 0
      %447 = vperm.xlu0 %446, %v313
      %v448 = vpop.permute.xlu0 %447
      %451 = vset.pattern.permute.xlu0 0
      %452 = vperm.xlu0 %451, %v314
      %v453 = vpop.permute.xlu0 %452
      %456 = vset.pattern.permute.xlu0 0
      %457 = vperm.xlu0 %456, %v315
      %v458 = vpop.permute.xlu0 %457
      %461 = vset.pattern.permute.xlu0 0
      %462 = vperm.xlu0 %461, %v316
      %v463 = vpop.permute.xlu0 %462
      %466 = vset.pattern.permute.xlu0 0
      %467 = vperm.xlu0 %466, %v317
      %v468 = vpop.permute.xlu0 %467
      %471 = vset.pattern.permute.xlu0 0
      %472 = vperm.xlu0 %471, %v318
      %v473 = vpop.permute.xlu0 %472
      %476 = vset.pattern.permute.xlu0 0
      %477 = vperm.xlu0 %476, %v319
      %v478 = vpop.permute.xlu0 %477
      %481 = vset.pattern.permute.xlu0 0
      %482 = vperm.xlu0 %481, %v320
      %v483 = vpop.permute.xlu0 %482
      %486 = vset.pattern.permute.xlu0 0
      %487 = vperm.xlu0 %486, %v321
      %v488 = vpop.permute.xlu0 %487
      %491 = vset.pattern.permute.xlu0 0
      %492 = vperm.xlu0 %491, %v322
      %v493 = vpop.permute.xlu0 %492
      %496 = vset.pattern.permute.xlu0 0
      %497 = vperm.xlu0 %496, %v323
      %v498 = vpop.permute.xlu0 %497
      %501 = vset.pattern.permute.xlu0 0
      %502 = vperm.xlu0 %501, %v324
      %v503 = vpop.permute.xlu0 %502
      %506 = vset.pattern.permute.xlu0 0
      %507 = vperm.xlu0 %506, %v325
      %v508 = vpop.permute.xlu0 %507
      %511 = vset.pattern.permute.xlu0 0
      %512 = vperm.xlu0 %511, %v326
      %v513 = vpop.permute.xlu0 %512
      %516 = vset.pattern.permute.xlu0 0
      %517 = vperm.xlu0 %516, %v327
      %v518 = vpop.permute.xlu0 %517
      %521 = vset.pattern.permute.xlu0 0
      %522 = vperm.xlu0 %521, %v328
      %v523 = vpop.permute.xlu0 %522
      %526 = vset.pattern.permute.xlu0 0
      %527 = vperm.xlu0 %526, %v329
      %v528 = vpop.permute.xlu0 %527
      %531 = vset.pattern.permute.xlu0 0
      %532 = vperm.xlu0 %531, %v330
      %v533 = vpop.permute.xlu0 %532
      %536 = vset.pattern.permute.xlu0 0
      %537 = vperm.xlu0 %536, %v331
      %v538 = vpop.permute.xlu0 %537
      %541 = vset.pattern.permute.xlu0 0
      %542 = vperm.xlu0 %541, %v332
      %v543 = vpop.permute.xlu0 %542
      %546 = vset.pattern.permute.xlu0 0
      %547 = vperm.xlu0 %546, %v333
      %v548 = vpop.permute.xlu0 %547
      %551 = vset.pattern.permute.xlu0 0
      %552 = vperm.xlu0 %551, %v334
      %v553 = vpop.permute.xlu0 %552
      %556 = vset.pattern.permute.xlu0 0
      %557 = vperm.xlu0 %556, %v335
      %v558 = vpop.permute.xlu0 %557
      %561 = vset.pattern.permute.xlu0 0
      %562 = vperm.xlu0 %561, %v336
      %v563 = vpop.permute.xlu0 %562
      %566 = vset.pattern.permute.xlu0 0
      %567 = vperm.xlu0 %566, %v337
      %v568 = vpop.permute.xlu0 %567
      %571 = vset.pattern.permute.xlu0 0
      %572 = vperm.xlu0 %571, %v338
      %v573 = vpop.permute.xlu0 %572
      %576 = vset.pattern.permute.xlu0 0
      %577 = vperm.xlu0 %576, %v339
      %v578 = vpop.permute.xlu0 %577
      %581 = vset.pattern.permute.xlu0 0
      %582 = vperm.xlu0 %581, %v340
      %v583 = vpop.permute.xlu0 %582
      %586 = vset.pattern.permute.xlu0 0
      %587 = vperm.xlu0 %586, %v341
      %v588 = vpop.permute.xlu0 %587
      %591 = vset.pattern.permute.xlu0 0
      %592 = vperm.xlu0 %591, %v342
      %v593 = vpop.permute.xlu0 %592
      %596 = vset.pattern.permute.xlu0 0
      %597 = vperm.xlu0 %596, %v343
      %v598 = vpop.permute.xlu0 %597
      %601 = vset.pattern.permute.xlu0 0
      %602 = vperm.xlu0 %601, %v344
      %v603 = vpop.permute.xlu0 %602
      %606 = vset.pattern.permute.xlu0 0
      %607 = vperm.xlu0 %606, %v345
      %v608 = vpop.permute.xlu0 %607
      %611 = vset.pattern.permute.xlu0 0
      %612 = vperm.xlu0 %611, %v346
      %v613 = vpop.permute.xlu0 %612
      %616 = vset.pattern.permute.xlu0 0
      %617 = vperm.xlu0 %616, %v347
      %v618 = vpop.permute.xlu0 %617
      %621 = vset.pattern.permute.xlu0 0
      %622 = vperm.xlu0 %621, %v348
      %v623 = vpop.permute.xlu0 %622
      %626 = vset.pattern.permute.xlu0 0
      %627 = vperm.xlu0 %626, %v349
      %v628 = vpop.permute.xlu0 %627
      %631 = vset.pattern.permute.xlu0 0
      %632 = vperm.xlu0 %631, %v350
      %v633 = vpop.permute.xlu0 %632
      %636 = vset.pattern.permute.xlu0 0
      %637 = vperm.xlu0 %636, %v351
      %v638 = vpop.permute.xlu0 %637
      %641 = vset.pattern.permute.xlu0 0
      %642 = vperm.xlu0 %641, %v352
      %v643 = vpop.permute.xlu0 %642
      %646 = vset.pattern.permute.xlu0 0
      %647 = vperm.xlu0 %646, %v353
      %v648 = vpop.permute.xlu0 %647
      %651 = vset.pattern.permute.xlu0 0
      %652 = vperm.xlu0 %651, %v354
      %v653 = vpop.permute.xlu0 %652
      %656 = vset.pattern.permute.xlu0 0
      %657 = vperm.xlu0 %656, %v355
      %v658 = vpop.permute.xlu0 %657
      %661 = vset.pattern.permute.xlu0 0
      %662 = vperm.xlu0 %661, %v356
      %v663 = vpop.permute.xlu0 %662
      %666 = vset.pattern.permute.xlu0 0
      %667 = vperm.xlu0 %666, %v357
      %v668 = vpop.permute.xlu0 %667
      %671 = vset.pattern.permute.xlu0 0
      %672 = vperm.xlu0 %671, %v358
      %v673 = vpop.permute.xlu0 %672
      %676 = vset.pattern.permute.xlu0 0
      %677 = vperm.xlu0 %676, %v359
      %v678 = vpop.permute.xlu0 %677
      %v680 = vmul.f32 %v232, %v363
      %v681 = vmul.f32 %v233, %v368
      %v682 = vmul.f32 %v234, %v373
      %v683 = vmul.f32 %v235, %v378
      %v684 = vmul.f32 %v236, %v383
      %v685 = vmul.f32 %v237, %v388
      %v686 = vmul.f32 %v238, %v393
      %v687 = vmul.f32 %v239, %v398
      %v688 = vmul.f32 %v240, %v403
      %v689 = vmul.f32 %v241, %v408
      %v690 = vmul.f32 %v242, %v413
      %v691 = vmul.f32 %v243, %v418
      %v692 = vmul.f32 %v244, %v423
      %v693 = vmul.f32 %v245, %v428
      %v694 = vmul.f32 %v246, %v433
      %v695 = vmul.f32 %v247, %v438
      %v696 = vmul.f32 %v248, %v443
      %v697 = vmul.f32 %v249, %v448
      %v698 = vmul.f32 %v250, %v453
      %v699 = vmul.f32 %v251, %v458
      %v700 = vmul.f32 %v252, %v463
      %v701 = vmul.f32 %v253, %v468
      %v702 = vmul.f32 %v254, %v473
      %v703 = vmul.f32 %v255, %v478
      %v704 = vmul.f32 %v256, %v483
      %v705 = vmul.f32 %v257, %v488
      %v706 = vmul.f32 %v258, %v493
      %v707 = vmul.f32 %v259, %v498
      %v708 = vmul.f32 %v260, %v503
      %v709 = vmul.f32 %v261, %v508
      %v710 = vmul.f32 %v262, %v513
      %v711 = vmul.f32 %v263, %v518
      %v712 = vmul.f32 %v264, %v523
      %v713 = vmul.f32 %v265, %v528
      %v714 = vmul.f32 %v266, %v533
      %v715 = vmul.f32 %v267, %v538
      %v716 = vmul.f32 %v268, %v543
      %v717 = vmul.f32 %v269, %v548
      %v718 = vmul.f32 %v270, %v553
      %v719 = vmul.f32 %v271, %v558
      %v720 = vmul.f32 %v272, %v563
      %v721 = vmul.f32 %v273, %v568
      %v722 = vmul.f32 %v274, %v573
      %v723 = vmul.f32 %v275, %v578
      %v724 = vmul.f32 %v276, %v583
      %v725 = vmul.f32 %v277, %v588
      %v726 = vmul.f32 %v278, %v593
      %v727 = vmul.f32 %v279, %v598
      %v728 = vmul.f32 %v280, %v603
      %v729 = vmul.f32 %v281, %v608
      %v730 = vmul.f32 %v282, %v613
      %v731 = vmul.f32 %v283, %v618
      %v732 = vmul.f32 %v284, %v623
      %v733 = vmul.f32 %v285, %v628
      %v734 = vmul.f32 %v286, %v633
      %v735 = vmul.f32 %v287, %v638
      %v736 = vmul.f32 %v288, %v643
      %v737 = vmul.f32 %v289, %v648
      %v738 = vmul.f32 %v290, %v653
      %v739 = vmul.f32 %v291, %v658
      %v740 = vmul.f32 %v292, %v663
      %v741 = vmul.f32 %v293, %v668
      %v742 = vmul.f32 %v294, %v673
      %v743 = vmul.f32 %v295, %v678
      %vm744 = vcmask 523264
      %745 = vst.msk [vmem:[%s229] sm:$0xff] %vm744, %v680
      %746 = vst.msk [vmem:[%s229 + $0x8] sm:$0xff] %vm744, %v681
      %747 = vst.msk [vmem:[%s229 + $0x10] sm:$0xff] %vm744, %v682
      %748 = vst.msk [vmem:[%s229 + $0x18] sm:$0xff] %vm744, %v683
      %749 = vst.msk [vmem:[%s229 + $0x20] sm:$0xff] %vm744, %v684
      %750 = vst.msk [vmem:[%s229 + $0x28] sm:$0xff] %vm744, %v685
      %751 = vst.msk [vmem:[%s229 + $0x30] sm:$0xff] %vm744, %v686
      %752 = vst.msk [vmem:[%s229 + $0x38] sm:$0xff] %vm744, %v687
      %753 = vst.msk [vmem:[%s229 + $0x40] sm:$0xff] %vm744, %v688
      %754 = vst.msk [vmem:[%s229 + $0x48] sm:$0xff] %vm744, %v689
      %755 = vst.msk [vmem:[%s229 + $0x50] sm:$0xff] %vm744, %v690
      %756 = vst.msk [vmem:[%s229 + $0x58] sm:$0xff] %vm744, %v691
      %757 = vst.msk [vmem:[%s229 + $0x60] sm:$0xff] %vm744, %v692
      %758 = vst.msk [vmem:[%s229 + $0x68] sm:$0xff] %vm744, %v693
      %759 = vst.msk [vmem:[%s229 + $0x70] sm:$0xff] %vm744, %v694
      %760 = vst.msk [vmem:[%s229 + $0x78] sm:$0xff] %vm744, %v695
      %761 = vst.msk [vmem:[%s229 + $0x80] sm:$0xff] %vm744, %v696
      %762 = vst.msk [vmem:[%s229 + $0x88] sm:$0xff] %vm744, %v697
      %763 = vst.msk [vmem:[%s229 + $0x90] sm:$0xff] %vm744, %v698
      %764 = vst.msk [vmem:[%s229 + $0x98] sm:$0xff] %vm744, %v699
      %765 = vst.msk [vmem:[%s229 + $0xa0] sm:$0xff] %vm744, %v700
      %766 = vst.msk [vmem:[%s229 + $0xa8] sm:$0xff] %vm744, %v701
      %767 = vst.msk [vmem:[%s229 + $0xb0] sm:$0xff] %vm744, %v702
      %768 = vst.msk [vmem:[%s229 + $0xb8] sm:$0xff] %vm744, %v703
      %769 = vst.msk [vmem:[%s229 + $0xc0] sm:$0xff] %vm744, %v704
      %770 = vst.msk [vmem:[%s229 + $0xc8] sm:$0xff] %vm744, %v705
      %771 = vst.msk [vmem:[%s229 + $0xd0] sm:$0xff] %vm744, %v706
      %772 = vst.msk [vmem:[%s229 + $0xd8] sm:$0xff] %vm744, %v707
      %773 = vst.msk [vmem:[%s229 + $0xe0] sm:$0xff] %vm744, %v708
      %774 = vst.msk [vmem:[%s229 + $0xe8] sm:$0xff] %vm744, %v709
      %775 = vst.msk [vmem:[%s229 + $0xf0] sm:$0xff] %vm744, %v710
      %776 = vst.msk [vmem:[%s229 + $0xf8] sm:$0xff] %vm744, %v711
      %777 = vst.msk [vmem:[%s229 + $0x100] sm:$0xff] %vm744, %v712
      %778 = vst.msk [vmem:[%s229 + $0x108] sm:$0xff] %vm744, %v713
      %779 = vst.msk [vmem:[%s229 + $0x110] sm:$0xff] %vm744, %v714
      %780 = vst.msk [vmem:[%s229 + $0x118] sm:$0xff] %vm744, %v715
      %781 = vst.msk [vmem:[%s229 + $0x120] sm:$0xff] %vm744, %v716
      %782 = vst.msk [vmem:[%s229 + $0x128] sm:$0xff] %vm744, %v717
      %783 = vst.msk [vmem:[%s229 + $0x130] sm:$0xff] %vm744, %v718
      %784 = vst.msk [vmem:[%s229 + $0x138] sm:$0xff] %vm744, %v719
      %785 = vst.msk [vmem:[%s229 + $0x140] sm:$0xff] %vm744, %v720
      %786 = vst.msk [vmem:[%s229 + $0x148] sm:$0xff] %vm744, %v721
      %787 = vst.msk [vmem:[%s229 + $0x150] sm:$0xff] %vm744, %v722
      %788 = vst.msk [vmem:[%s229 + $0x158] sm:$0xff] %vm744, %v723
      %789 = vst.msk [vmem:[%s229 + $0x160] sm:$0xff] %vm744, %v724
      %790 = vst.msk [vmem:[%s229 + $0x168] sm:$0xff] %vm744, %v725
      %791 = vst.msk [vmem:[%s229 + $0x170] sm:$0xff] %vm744, %v726
      %792 = vst.msk [vmem:[%s229 + $0x178] sm:$0xff] %vm744, %v727
      %793 = vst.msk [vmem:[%s229 + $0x180] sm:$0xff] %vm744, %v728
      %794 = vst.msk [vmem:[%s229 + $0x188] sm:$0xff] %vm744, %v729
      %795 = vst.msk [vmem:[%s229 + $0x190] sm:$0xff] %vm744, %v730
      %796 = vst.msk [vmem:[%s229 + $0x198] sm:$0xff] %vm744, %v731
      %797 = vst.msk [vmem:[%s229 + $0x1a0] sm:$0xff] %vm744, %v732
      %798 = vst.msk [vmem:[%s229 + $0x1a8] sm:$0xff] %vm744, %v733
      %799 = vst.msk [vmem:[%s229 + $0x1b0] sm:$0xff] %vm744, %v734
      %800 = vst.msk [vmem:[%s229 + $0x1b8] sm:$0xff] %vm744, %v735
      %801 = vst.msk [vmem:[%s229 + $0x1c0] sm:$0xff] %vm744, %v736
      %802 = vst.msk [vmem:[%s229 + $0x1c8] sm:$0xff] %vm744, %v737
      %803 = vst.msk [vmem:[%s229 + $0x1d0] sm:$0xff] %vm744, %v738
      %804 = vst.msk [vmem:[%s229 + $0x1d8] sm:$0xff] %vm744, %v739
      %805 = vst.msk [vmem:[%s229 + $0x1e0] sm:$0xff] %vm744, %v740
      %806 = vst.msk [vmem:[%s229 + $0x1e8] sm:$0xff] %vm744, %v741
      %807 = vst.msk [vmem:[%s229 + $0x1f0] sm:$0xff] %vm744, %v742
      %808 = vst.msk [vmem:[%s229 + $0x1f8] sm:$0xff] %vm744, %v743
      %s809 = smul.u32 8, %s17
      %s810 = smul.u32 8, %s18
      %p811 = scmp.lt.s32.totalorder %s809, 15
      %s812 = scalar_select %p811, %s809, 15
      %p813 = scmp.lt.s32.totalorder %s810, 7
      %s814 = scalar_select %p813, %s810, 7
      %s815 = smul.addr %s812, 8
      %s816 = sadd.s32 %s814, %s815
      %s817 = smul.addr %s816, 8
      %s818 = scalar_lea.vmem %s2, %s817
      // Predicated region
      $region29: #{chgc_forward.3} parent=27 // pred_check
        %p819 = pneg %p101
      $region30: #{chgc_forward.3} parent=27 // pred_check_branch
        %821 = sbr.rel (%p819) target = $region32
      $region31: #{chgc_forward.3} parent=27 // pred_region
        %s822 = smul.u32 8, %s17
        %s823 = smul.u32 8, %s18
      $region32: #{chgc_forward.3} parent=27 // pred_fallthru
        _
    $region28: #{chgc_forward.3} parent=5 // pred_fallthru
      _
    %p824 = scmp.le.s32.totalorder 2, %s8
    // Predicated region
    $region33: #{chgc_forward.3} parent=5 // pred_check
      %p825 = pneg %p824
    $region34: #{chgc_forward.3} parent=5 // pred_check_branch
      %827 = sbr.rel (%p825) target = $region36
    $region35: #{chgc_forward.3} parent=5 // pred_region
      %s828 = ssub.s32 %s8, 2
      // Predicated region
      $region37: #{chgc_forward.3} parent=35 // pred_check
        %p829 = pneg %p107
      $region38: #{chgc_forward.3} parent=35 // pred_check_branch
        %831 = sbr.rel (%p829) target = $region40
      $region39: #{chgc_forward.3} parent=35 // pred_region
        %s832 = smul.u32 8, %s19
        %s833 = smul.u32 8, %s20
        %p834 = scmp.lt.s32.totalorder %s832, 15
        %s835 = scalar_select %p834, %s832, 15
        %p836 = scmp.lt.s32.totalorder %s833, 7
        %s837 = scalar_select %p836, %s833, 7
        %s838 = smul.addr %s835, 8
        %s839 = sadd.s32 %s837, %s838
        %s840 = smul.addr %s839, 8
        %s841 = scalar_lea.vmem %s2, %s840
      $region40: #{chgc_forward.3} parent=35 // pred_fallthru
        _
    $region36: #{chgc_forward.3} parent=5 // pred_fallthru
      _
  $region6: #{chgc_forward.3} parent=0 // loop_footer
    %s12 = sadd.s32 1, %s8
  $region7: #{chgc_forward.3} parent=0 // loop_footer_branch
    %7 = sbr.rel target = $region3
  $region8: #{chgc_forward.3} parent=0 // loop_exit
    _

</llo_original>
